<compile_context>
chip_gen: v7x
topology: tpu7x:2x2x1
jax: 0.10.0
libtpu: 0.0.40
codegen_flags: <defaults>
</compile_context>

<pallas_src>
import functools

import jax
import jax.numpy as jnp
from jax.experimental import pallas as pl
from jax.experimental.pallas import tpu as pltpu

BN_EPS = 1e-5


def _round_up(x, m):
    return (x + m - 1) // m * m


def _softplus(x):
    # torch.nn.functional.softplus (beta=1), numerically stable form.
    return jnp.maximum(x, 0.0) + jnp.log1p(jnp.exp(-jnp.abs(x)))


# ---------------------------------------------------------------------------
# Kernel 1: batch-tiled MLP + fused mu|lv projection + per-tile BN partials.
# ---------------------------------------------------------------------------
def _encoder_mlp_kernel(
    x_ref,        # [TM, Cp]   (matmul dtype)
    w1_ref,       # [Cp, Hp]   (matmul dtype)
    b1_ref,       # [1,  Hp]   f32
    w2_ref,       # [Hp, Hp]
    b2_ref,       # [1,  Hp]
    wmlv_ref,     # [Hp, P ]   packed [wmu | wlv | 0]
    bmlv_ref,     # [1,  P ]
    mulv_ref,     # out: [TM, P]    raw (un-normalized) mu|lv
    psum_ref,     # out: [1, 1, P]  per-tile sum
    psumsq_ref,   # out: [1, 1, P]  per-tile sum of squares
    *,
    batch,        # true batch size (rows >= batch are padding)
    block_b,      # TM
    n_chunks,     # independent row sub-chunks (MXU/EUP overlap)
    mm_dtype,
):
    i = pl.program_id(0)
    rows = block_b // n_chunks

    b1 = b1_ref[...]
    b2 = b2_ref[...]
    bmlv = bmlv_ref[...]

    ps_acc = None
    pss_acc = None
    # Static unrolled sub-chunk loop: chunks are independent, so the LLO
    # scheduler can co-issue one chunk's MXU work with another's softplus (EUP).
    for c in range(n_chunks):
        r0 = c * rows
        x = x_ref[pl.ds(r0, rows), :]
        h = jnp.dot(x, w1_ref[...], preferred_element_type=jnp.float32) + b1
        h = _softplus(h)
        h = jnp.dot(h.astype(mm_dtype), w2_ref[...],
                    preferred_element_type=jnp.float32) + b2
        h = _softplus(h)
        # dropout: identity. TODO(synk): training-mode RNG dropout not implemented.
        mulv = jnp.dot(h.astype(mm_dtype), wmlv_ref[...],
                       preferred_element_type=jnp.float32) + bmlv
        mulv_ref[pl.ds(r0, rows), :] = mulv

        # BatchNorm partial statistics; mask out padded rows of the last tile.
        row = (jax.lax.broadcasted_iota(jnp.int32, mulv.shape, 0)
               + i * block_b + r0)
        mv = jnp.where(row < batch, mulv, 0.0)
        ps = jnp.sum(mv, axis=0, keepdims=True)          # (1, P)
        pss = jnp.sum(mv * mv, axis=0, keepdims=True)    # (1, P)
        ps_acc = ps if ps_acc is None else ps_acc + ps
        pss_acc = pss if pss_acc is None else pss_acc + pss

    psum_ref[...] = ps_acc.reshape(psum_ref.shape)
    psumsq_ref[...] = pss_acc.reshape(psumsq_ref.shape)


# ---------------------------------------------------------------------------
# Kernel 2 (tiny, grid=()): reduce per-tile partials -> global mean / inv_std.
# ---------------------------------------------------------------------------
def _bn_stats_kernel(psum_ref, psumsq_ref, mean_ref, rstd_ref, *, batch):
    p = psum_ref.shape[-1]
    s = jnp.sum(psum_ref[...].reshape(-1, p), axis=0, keepdims=True)
    ss = jnp.sum(psumsq_ref[...].reshape(-1, p), axis=0, keepdims=True)
    inv_n = 1.0 / batch
    mean = s * inv_n
    # Single-pass biased batch variance.  TODO(synk): shifted two-pass variant
    # would be more robust if pre-BN activation means are large vs their std.
    var = jnp.maximum(ss * inv_n - mean * mean, 0.0)
    mean_ref[...] = mean
    rstd_ref[...] = jax.lax.rsqrt(var + BN_EPS)


# ---------------------------------------------------------------------------
# Kernel 3: lane-dense elementwise normalize + exp(0.5 * logvar), in place.
# ---------------------------------------------------------------------------
def _bn_finalize_kernel(mulv_ref, mean_ref, rstd_ref, out_ref, *,
                        num_topics, kp_loc, split_halves):
    bn = (mulv_ref[...] - mean_ref[...]) * rstd_ref[...]
    if split_halves:
        # loc half [0:kp_loc] and lv half [kp_loc:] are each 128-aligned.
        out_ref[:, :kp_loc] = bn[:, :kp_loc]
        out_ref[:, kp_loc:] = jnp.exp(0.5 * bn[:, kp_loc:])
    else:
        col = jax.lax.broadcasted_iota(jnp.int32, bn.shape, 1)
        is_lv = jnp.logical_and(col >= num_topics, col < 2 * num_topics)
        out_ref[...] = jnp.where(is_lv, jnp.exp(0.5 * bn), bn)


# ---------------------------------------------------------------------------
# Wrapper
# ---------------------------------------------------------------------------
def encoder_network_forward(x, params, *, block_b=512,
                            matmul_dtype=jnp.bfloat16):
    """x: [B, C] float32.  params: dict of pre-transposed weights/biases.

    Returns (logtheta_loc, logtheta_scale), each [B, num_topics] float32.
    """
    B, C = x.shape
    H = params["w1"].shape[1]
    K = params["wmu"].shape[1]

    f32 = jnp.float32
    mm_dtype = jnp.dtype(matmul_dtype)
    itm = mm_dtype.itemsize
    row_align = 16 if mm_dtype == jnp.bfloat16 else 8
    assert block_b % row_align == 0

    Cp = _round_up(C, 128)
    Hp = _round_up(H, 128)
    Kp = _round_up(K, 128)
    # Pack mu|lv as two separately 128-padded halves iff it costs no extra lanes
    # (i.e. K > 64); otherwise use the tight interleaved packing + column mask.
    split_halves = (2 * Kp == _round_up(2 * K, 128))
    P = 2 * Kp if split_halves else _round_up(2 * K, 128)

    # Batch tile: cap at block_b; split mid-size batches into >=2 tiles so the
    # "parallel" grid axis can be sharded across both v7x TensorCores.
    if B > block_b:
        TM = block_b
    elif B >= 128:
        TM = _round_up(-(-B // 2), row_align)
    else:
        TM = _round_up(B, row_align)
    Bp = _round_up(B, TM)
    nt = Bp // TM

    # Intra-tile row sub-chunks (>=64 rows each) for MXU/EUP overlap.
    n_chunks = 1
    for cand in (4, 2):
        rows = TM // cand
        if TM % cand == 0 and rows >= 64 and rows % row_align == 0:
            n_chunks = cand
            break

    # ---- pad & cast parameters -------------------------------------------
    xp = jnp.pad(x.astype(f32), ((0, Bp - B), (0, Cp - C))).astype(mm_dtype)
    w1 = jnp.pad(params["w1"], ((0, Cp - C), (0, Hp - H))).astype(mm_dtype)
    b1 = jnp.pad(params["b1"], ((0, 0), (0, Hp - H))).astype(f32)
    w2 = jnp.pad(params["w2"], ((0, Hp - H), (0, Hp - H))).astype(mm_dtype)
    b2 = jnp.pad(params["b2"], ((0, 0), (0, Hp - H))).astype(f32)
    if split_halves:
        wmlv = jnp.concatenate(
            [jnp.pad(params["wmu"], ((0, Hp - H), (0, Kp - K))),
             jnp.pad(params["wlv"], ((0, Hp - H), (0, Kp - K)))], axis=1)
        bmlv = jnp.concatenate(
            [jnp.pad(params["bmu"], ((0, 0), (0, Kp - K))),
             jnp.pad(params["blv"], ((0, 0), (0, Kp - K)))], axis=1)
    else:
        wmlv = jnp.pad(jnp.concatenate([params["wmu"], params["wlv"]], axis=1),
                       ((0, Hp - H), (0, P - 2 * K)))
        bmlv = jnp.pad(jnp.concatenate([params["bmu"], params["blv"]], axis=1),
                       ((0, 0), (0, P - 2 * K)))
    wmlv = wmlv.astype(mm_dtype)
    bmlv = bmlv.astype(f32)

    # ---- explicit scoped-VMEM budgets (need * headroom, clamped) ----------
    def _vmem_limit(nbytes):
        return int(min(64 << 20, max(32 << 20, int(nbytes * 1.5))))

    vmem1 = _vmem_limit(
        itm * (Cp * Hp + Hp * Hp + Hp * P)      # resident weights (single buffer)
        + 4 * (2 * Hp + P)                      # resident biases
        + 2 * itm * TM * Cp                     # x tile, double buffered
        + 2 * 4 * TM * P                        # mulv output tile, double buffered
        + 2 * 2 * 4 * P                         # stat partial output tiles
        + 4 * 4 * TM * Hp                       # intermediate activations slack
    )

    cost = pl.CostEstimate(
        flops=int(2 * Bp * (Cp * Hp + Hp * Hp + Hp * P)),
        transcendentals=int(4 * Bp * Hp),       # exp + log1p per softplus x 2 layers
        bytes_accessed=int(
            itm * (Bp * Cp + Cp * Hp + Hp * Hp + Hp * P)
            + 4 * (2 * Hp + P)
            + 4 * (Bp * P + 2 * nt * P)),
    )

    mlp_kernel = functools.partial(
        _encoder_mlp_kernel, batch=B, block_b=TM, n_chunks=n_chunks,
        mm_dtype=mm_dtype)

    def _run_mlp(single_buffer_weights):
        pipeline_mode = pl.Buffered(1) if single_buffer_weights else None

        def resident(shape):
            return pl.BlockSpec(shape, lambda i: (0,) * len(shape),
                                pipeline_mode=pipeline_mode)

        return pl.pallas_call(
            mlp_kernel,
            out_shape=(
                jax.ShapeDtypeStruct((Bp, P), f32),
                jax.ShapeDtypeStruct((nt, 1, P), f32),
                jax.ShapeDtypeStruct((nt, 1, P), f32),
            ),
            grid=(nt,),
            in_specs=[
                pl.BlockSpec((TM, Cp), lambda i: (i, 0)),   # x tile (pipelined)
                resident((Cp, Hp)),
                resident((1, Hp)),
                resident((Hp, Hp)),
                resident((1, Hp)),
                resident((Hp, P)),
                resident((1, P)),
            ],
            out_specs=(
                pl.BlockSpec((TM, P), lambda i: (i, 0)),
                pl.BlockSpec((1, 1, P), lambda i: (i, 0, 0)),
                pl.BlockSpec((1, 1, P), lambda i: (i, 0, 0)),
            ),
            compiler_params=pltpu.CompilerParams(
                dimension_semantics=("parallel",),
                vmem_limit_bytes=vmem1),
            cost_estimate=cost,
        )(xp, w1, b1, w2, b2, wmlv, bmlv)

    try:
        mulv, psum, psumsq = _run_mlp(True)
    except Exception:
        # Fallback if this jax build rejects Buffered(1) for pipelined inputs.
        mulv, psum, psumsq = _run_mlp(False)

    # ---- tiny stats reduce: (nt, 1, P) partials -> mean / inv_std ----------
    mean, rstd = pl.pallas_call(
        functools.partial(_bn_stats_kernel, batch=B),
        out_shape=(jax.ShapeDtypeStruct((1, P), f32),
                   jax.ShapeDtypeStruct((1, P), f32)),
    )(psum, psumsq)

    # ---- finalize: larger tile, normalize mulv slab in place ---------------
    TM2 = TM
    while TM2 * 2 <= min(Bp, 1024) and Bp % (TM2 * 2) == 0:
        TM2 *= 2
    nt2 = Bp // TM2
    vmem2 = _vmem_limit(2 * (2 * 4 * TM2 * P) + 2 * 2 * 4 * P)

    out = pl.pallas_call(
        functools.partial(_bn_finalize_kernel, num_topics=K, kp_loc=Kp,
                          split_halves=split_halves),
        out_shape=jax.ShapeDtypeStruct((Bp, P), f32),
        grid=(nt2,),
        in_specs=[
            pl.BlockSpec((TM2, P), lambda i: (i, 0)),
            pl.BlockSpec((1, P), lambda i: (0, 0)),
            pl.BlockSpec((1, P), lambda i: (0, 0)),
        ],
        out_specs=pl.BlockSpec((TM2, P), lambda i: (i, 0)),
        input_output_aliases={0: 0},   # overwrite the mulv slab in place
        compiler_params=pltpu.CompilerParams(
            dimension_semantics=("parallel",),
            vmem_limit_bytes=vmem2),
    )(mulv, mean, rstd)

    loc = out[:B, :K]
    scale_start = Kp if split_halves else K
    scale = out[:B, scale_start:scale_start + K]
    return loc, scale


def init_params(key, contextualized_size, num_topics, hidden):
    """Deterministic init mimicking nn.Linear default (uniform +/- 1/sqrt(fan_in)).
    Weights are stored transposed: [in_features, out_features]."""
    ks = jax.random.split(key, 8)

    def lin(kw, kb, fan_in, fan_out):
        bound = 1.0 / jnp.sqrt(fan_in)
        w = jax.random.uniform(kw, (fan_in, fan_out), jnp.float32, -bound, bound)
        b = jax.random.uniform(kb, (1, fan_out), jnp.float32, -bound, bound)
        return w, b

    w1, b1 = lin(ks[0], ks[1], contextualized_size, hidden)
    w2, b2 = lin(ks[2], ks[3], hidden, hidden)
    wmu, bmu = lin(ks[4], ks[5], hidden, num_topics)
    wlv, blv = lin(ks[6], ks[7], hidden, num_topics)
    return dict(w1=w1, b1=b1, w2=w2, b2=b2, wmu=wmu, bmu=bmu, wlv=wlv, blv=blv)


def _reference(x, p):
    """Pure-JAX reference for sanity checking."""
    h = jax.nn.softplus(x @ p["w1"] + p["b1"])
    h = jax.nn.softplus(h @ p["w2"] + p["b2"])
    mu = h @ p["wmu"] + p["bmu"]
    lv = h @ p["wlv"] + p["blv"]

    def bn(v):
        m = v.mean(axis=0, keepdims=True)
        var = ((v - m) ** 2).mean(axis=0, keepdims=True)
        return (v - m) / jnp.sqrt(var + BN_EPS)

    return bn(mu), jnp.exp(0.5 * bn(lv))


if __name__ == "__main__":
    B, C, H, K = 8, 64, 32, 16   # batch, contextualized_size, hidden, num_topics

    key = jax.random.PRNGKey(0)
    kx, kp, kx2 = jax.random.split(key, 3)
    x = jax.random.normal(kx, (B, C), jnp.float32)
    params = init_params(kp, C, K, H)
    ref_loc, ref_scale = _reference(x, params)

    # 1) f32 MXU-operand path: tight tolerance vs the pure-JAX reference.
    loc, scale = encoder_network_forward(x, params, matmul_dtype=jnp.float32)
    jax.block_until_ready((loc, scale))
    assert loc.shape == (B, K) and scale.shape == (B, K)
    assert jnp.allclose(loc, ref_loc, atol=1e-3, rtol=1e-3)
    assert jnp.allclose(scale, ref_scale, atol=1e-3, rtol=1e-3)

    # 2) Default path: bf16 MXU operands, f32 accumulate + f32 elementwise math.
    loc_bf, scale_bf = encoder_network_forward(x, params)
    jax.block_until_ready((loc_bf, scale_bf))
    assert jnp.allclose(loc_bf, ref_loc, atol=1e-1, rtol=1e-1)
    assert jnp.allclose(scale_bf, ref_scale, atol=1e-1, rtol=1e-1)

    # 3) Multi-tile path (batch not a multiple of the tile): exercises the
    #    cross-tile global BatchNorm statistics + padded-row masking.
    B2 = 20
    x2 = jax.random.normal(kx2, (B2, C), jnp.float32)
    ref_loc2, ref_scale2 = _reference(x2, params)
    loc2, scale2 = encoder_network_forward(x2, params, block_b=16,
                                           matmul_dtype=jnp.float32)
    jax.block_until_ready((loc2, scale2))
    assert jnp.allclose(loc2, ref_loc2, atol=1e-3, rtol=1e-3)
    assert jnp.allclose(scale2, ref_scale2, atol=1e-3, rtol=1e-3)

    # 4) Split-halves packing path (K > 64): lane-aligned loc / lv halves.
    K4, H4 = 96, 64
    params4 = init_params(jax.random.PRNGKey(1), C, K4, H4)
    ref_loc4, ref_scale4 = _reference(x, params4)
    loc4, scale4 = encoder_network_forward(x, params4, matmul_dtype=jnp.float32)
    jax.block_until_ready((loc4, scale4))
    assert loc4.shape == (B, K4) and scale4.shape == (B, K4)
    assert jnp.allclose(loc4, ref_loc4, atol=1e-3, rtol=1e-3)
    assert jnp.allclose(scale4, ref_scale4, atol=1e-3, rtol=1e-3)

    print("KERNEL_OK")
</pallas_src>

<mosaic_0001>
module attributes {stable_mosaic.version = 11 : i64} {
  func.func @_encoder_mlp_kernel(%arg0: i32, %arg1: memref<8x128xf32, #tpu.memory_space<vmem>>, %arg2: memref<128x128xf32, #tpu.memory_space<vmem>>, %arg3: memref<1x128xf32, #tpu.memory_space<vmem>>, %arg4: memref<128x128xf32, #tpu.memory_space<vmem>>, %arg5: memref<1x128xf32, #tpu.memory_space<vmem>>, %arg6: memref<128x128xf32, #tpu.memory_space<vmem>>, %arg7: memref<1x128xf32, #tpu.memory_space<vmem>>, %arg8: memref<8x128xf32, #tpu.memory_space<vmem>>, %arg9: memref<1x1x128xf32, #tpu.memory_space<vmem>>, %arg10: memref<1x1x128xf32, #tpu.memory_space<vmem>>) attributes {dimension_semantics = [#tpu.dimension_semantics<parallel>], iteration_bounds = array<i64: 1>, scalar_prefetch = 0 : i64, scratch_operands = 0 : i64, tpu.core_type = #tpu.core_type<tc>, window_params = [{transform_indices = @transform_0, window_bounds = array<i64: 8, 128>}, {pipeline_mode = #tpu.pipeline_mode<synchronous>, transform_indices = @transform_1, window_bounds = array<i64: 128, 128>}, {pipeline_mode = #tpu.pipeline_mode<synchronous>, transform_indices = @transform_2, window_bounds = array<i64: 1, 128>}, {pipeline_mode = #tpu.pipeline_mode<synchronous>, transform_indices = @transform_3, window_bounds = array<i64: 128, 128>}, {pipeline_mode = #tpu.pipeline_mode<synchronous>, transform_indices = @transform_4, window_bounds = array<i64: 1, 128>}, {pipeline_mode = #tpu.pipeline_mode<synchronous>, transform_indices = @transform_5, window_bounds = array<i64: 128, 128>}, {pipeline_mode = #tpu.pipeline_mode<synchronous>, transform_indices = @transform_6, window_bounds = array<i64: 1, 128>}, {transform_indices = @transform_7, window_bounds = array<i64: 8, 128>}, {transform_indices = @transform_8, window_bounds = array<i64: 1, 1, 128>}, {transform_indices = @transform_9, window_bounds = array<i64: 1, 1, 128>}]} {
    %c0 = arith.constant 0 : index
    %c0_0 = arith.constant 0 : index
    %0 = vector.load %arg3[%c0, %c0_0] : memref<1x128xf32, #tpu.memory_space<vmem>>, vector<1x128xf32>
    %c0_1 = arith.constant 0 : index
    %c0_2 = arith.constant 0 : index
    %1 = vector.load %arg5[%c0_1, %c0_2] : memref<1x128xf32, #tpu.memory_space<vmem>>, vector<1x128xf32>
    %c0_3 = arith.constant 0 : index
    %c0_4 = arith.constant 0 : index
    %2 = vector.load %arg7[%c0_3, %c0_4] : memref<1x128xf32, #tpu.memory_space<vmem>>, vector<1x128xf32>
    %c0_5 = arith.constant 0 : index
    %c0_6 = arith.constant 0 : index
    %3 = vector.load %arg1[%c0_5, %c0_6] : memref<8x128xf32, #tpu.memory_space<vmem>>, vector<8x128xf32>
    %c0_7 = arith.constant 0 : index
    %c0_8 = arith.constant 0 : index
    %4 = vector.load %arg2[%c0_7, %c0_8] : memref<128x128xf32, #tpu.memory_space<vmem>>, vector<128x128xf32>
    %cst = arith.constant dense<0.000000e+00> : vector<8x128xf32>
    %5 = tpu.matmul %3, %4, %cst {dimension_numbers = #tpu.dot_dimension_numbers<[1], [0], [0], [1], [0, 0, 1, 1], [], []>} : vector<8x128xf32>, vector<128x128xf32>, vector<8x128xf32> -> vector<8x128xf32>
    %6 = vector.broadcast %0 : vector<1x128xf32> to vector<8x128xf32>
    %7 = arith.addf %5, %6 : vector<8x128xf32>
    %cst_9 = arith.constant 0.000000e+00 : f32
    %8 = vector.broadcast %cst_9 : f32 to vector<8x128xf32>
    %9 = arith.maximumf %7, %8 : vector<8x128xf32>
    %10 = math.absf %7 : vector<8x128xf32>
    %cst_10 = arith.constant 0.000000e+00 : f32
    %11 = vector.broadcast %cst_10 : f32 to vector<8x128xf32>
    %12 = arith.subf %11, %10 : vector<8x128xf32>
    %13 = math.exp %12 : vector<8x128xf32>
    %14 = math.log1p %13 : vector<8x128xf32>
    %15 = arith.addf %9, %14 : vector<8x128xf32>
    %c0_11 = arith.constant 0 : index
    %c0_12 = arith.constant 0 : index
    %16 = vector.load %arg4[%c0_11, %c0_12] : memref<128x128xf32, #tpu.memory_space<vmem>>, vector<128x128xf32>
    %cst_13 = arith.constant dense<0.000000e+00> : vector<8x128xf32>
    %17 = tpu.matmul %15, %16, %cst_13 {dimension_numbers = #tpu.dot_dimension_numbers<[1], [0], [0], [1], [0, 0, 1, 1], [], []>} : vector<8x128xf32>, vector<128x128xf32>, vector<8x128xf32> -> vector<8x128xf32>
    %18 = vector.broadcast %1 : vector<1x128xf32> to vector<8x128xf32>
    %19 = arith.addf %17, %18 : vector<8x128xf32>
    %cst_14 = arith.constant 0.000000e+00 : f32
    %20 = vector.broadcast %cst_14 : f32 to vector<8x128xf32>
    %21 = arith.maximumf %19, %20 : vector<8x128xf32>
    %22 = math.absf %19 : vector<8x128xf32>
    %cst_15 = arith.constant 0.000000e+00 : f32
    %23 = vector.broadcast %cst_15 : f32 to vector<8x128xf32>
    %24 = arith.subf %23, %22 : vector<8x128xf32>
    %25 = math.exp %24 : vector<8x128xf32>
    %26 = math.log1p %25 : vector<8x128xf32>
    %27 = arith.addf %21, %26 : vector<8x128xf32>
    %c0_16 = arith.constant 0 : index
    %c0_17 = arith.constant 0 : index
    %28 = vector.load %arg6[%c0_16, %c0_17] : memref<128x128xf32, #tpu.memory_space<vmem>>, vector<128x128xf32>
    %cst_18 = arith.constant dense<0.000000e+00> : vector<8x128xf32>
    %29 = tpu.matmul %27, %28, %cst_18 {dimension_numbers = #tpu.dot_dimension_numbers<[1], [0], [0], [1], [0, 0, 1, 1], [], []>} : vector<8x128xf32>, vector<128x128xf32>, vector<8x128xf32> -> vector<8x128xf32>
    %30 = vector.broadcast %2 : vector<1x128xf32> to vector<8x128xf32>
    %31 = arith.addf %29, %30 : vector<8x128xf32>
    %c0_19 = arith.constant 0 : index
    %c0_20 = arith.constant 0 : index
    %32 = vector.load %arg8[%c0_19, %c0_20] : memref<8x128xf32, #tpu.memory_space<vmem>>, vector<8x128xf32>
    tpu.vector_store %arg8[%c0_19, %c0_20], %31 {strides = array<i32>} : memref<8x128xf32, #tpu.memory_space<vmem>>, vector<8x128xf32>,
    %33 = tpu.iota {dimensions = array<i32: 0>} : vector<8x128xi32>
    %c8_i32 = arith.constant 8 : i32
    %34 = arith.muli %arg0, %c8_i32 : i32
    %35 = vector.broadcast %34 : i32 to vector<8x128xi32>
    %36 = arith.addi %33, %35 : vector<8x128xi32>
    %c0_i32 = arith.constant 0 : i32
    %37 = vector.broadcast %c0_i32 : i32 to vector<8x128xi32>
    %38 = arith.addi %36, %37 : vector<8x128xi32>
    %c8_i32_21 = arith.constant 8 : i32
    %39 = vector.broadcast %c8_i32_21 : i32 to vector<8x128xi32>
    %40 = arith.cmpi slt, %38, %39 : vector<8x128xi32>
    %cst_22 = arith.constant 0.000000e+00 : f32
    %41 = vector.broadcast %cst_22 : f32 to vector<8x128xf32>
    %42 = arith.select %40, %31, %41 : vector<8x128xi1>, vector<8x128xf32>
    %cst_23 = arith.constant dense<0.000000e+00> : vector<128xf32>
    %43 = vector.multi_reduction <add>, %42, %cst_23 [0] : vector<8x128xf32> to vector<128xf32>
    %44 = vector.shape_cast %43 : vector<128xf32> to vector<1x128xf32>
    %45 = arith.mulf %42, %42 : vector<8x128xf32>
    %cst_24 = arith.constant dense<0.000000e+00> : vector<128xf32>
    %46 = vector.multi_reduction <add>, %45, %cst_24 [0] : vector<8x128xf32> to vector<128xf32>
    %47 = vector.shape_cast %46 : vector<128xf32> to vector<1x128xf32>
    %48 = vector.shape_cast %44 : vector<1x128xf32> to vector<1x1x128xf32>
    %c0_25 = arith.constant 0 : index
    %c0_26 = arith.constant 0 : index
    %c0_27 = arith.constant 0 : index
    %49 = vector.load %arg9[%c0_25, %c0_26, %c0_27] : memref<1x1x128xf32, #tpu.memory_space<vmem>>, vector<1x1x128xf32>
    tpu.vector_store %arg9[%c0_25, %c0_26, %c0_27], %48 {strides = array<i32>} : memref<1x1x128xf32, #tpu.memory_space<vmem>>, vector<1x1x128xf32>,
    %50 = vector.shape_cast %47 : vector<1x128xf32> to vector<1x1x128xf32>
    %c0_28 = arith.constant 0 : index
    %c0_29 = arith.constant 0 : index
    %c0_30 = arith.constant 0 : index
    %51 = vector.load %arg10[%c0_28, %c0_29, %c0_30] : memref<1x1x128xf32, #tpu.memory_space<vmem>>, vector<1x1x128xf32>
    tpu.vector_store %arg10[%c0_28, %c0_29, %c0_30], %50 {strides = array<i32>} : memref<1x1x128xf32, #tpu.memory_space<vmem>>, vector<1x1x128xf32>,
    return
  }
  func.func @transform_0(%arg0: i32) -> (i32, i32) {
    %c0_i32 = arith.constant 0 : i32
    %c0_i32_0 = arith.constant 0 : i32
    return %arg0, %c0_i32 : i32, i32
  }
  func.func @transform_1(%arg0: i32) -> (i32, i32) {
    %c0_i32 = arith.constant 0 : i32
    %c0_i32_0 = arith.constant 0 : i32
    %c0_i32_1 = arith.constant 0 : i32
    return %c0_i32, %c0_i32_0 : i32, i32
  }
  func.func @transform_2(%arg0: i32) -> (i32, i32) {
    %c0_i32 = arith.constant 0 : i32
    %c0_i32_0 = arith.constant 0 : i32
    %c0_i32_1 = arith.constant 0 : i32
    return %c0_i32, %c0_i32_0 : i32, i32
  }
  func.func @transform_3(%arg0: i32) -> (i32, i32) {
    %c0_i32 = arith.constant 0 : i32
    %c0_i32_0 = arith.constant 0 : i32
    %c0_i32_1 = arith.constant 0 : i32
    return %c0_i32, %c0_i32_0 : i32, i32
  }
  func.func @transform_4(%arg0: i32) -> (i32, i32) {
    %c0_i32 = arith.constant 0 : i32
    %c0_i32_0 = arith.constant 0 : i32
    %c0_i32_1 = arith.constant 0 : i32
    return %c0_i32, %c0_i32_0 : i32, i32
  }
  func.func @transform_5(%arg0: i32) -> (i32, i32) {
    %c0_i32 = arith.constant 0 : i32
    %c0_i32_0 = arith.constant 0 : i32
    %c0_i32_1 = arith.constant 0 : i32
    return %c0_i32, %c0_i32_0 : i32, i32
  }
  func.func @transform_6(%arg0: i32) -> (i32, i32) {
    %c0_i32 = arith.constant 0 : i32
    %c0_i32_0 = arith.constant 0 : i32
    %c0_i32_1 = arith.constant 0 : i32
    return %c0_i32, %c0_i32_0 : i32, i32
  }
  func.func @transform_7(%arg0: i32) -> (i32, i32) {
    %c0_i32 = arith.constant 0 : i32
    %c0_i32_0 = arith.constant 0 : i32
    return %arg0, %c0_i32 : i32, i32
  }
  func.func @transform_8(%arg0: i32) -> (i32, i32, i32) {
    %c0_i32 = arith.constant 0 : i32
    %c0_i32_0 = arith.constant 0 : i32
    %c0_i32_1 = arith.constant 0 : i32
    return %arg0, %c0_i32, %c0_i32_0 : i32, i32, i32
  }
  func.func @transform_9(%arg0: i32) -> (i32, i32, i32) {
    %c0_i32 = arith.constant 0 : i32
    %c0_i32_0 = arith.constant 0 : i32
    %c0_i32_1 = arith.constant 0 : i32
    return %arg0, %c0_i32, %c0_i32_0 : i32, i32, i32
  }
}

module attributes {stable_mosaic.version = 11 : i64} {
  func.func @_encoder_mlp_kernel(%arg0: i32, %arg1: memref<8x128xf32, #tpu.memory_space<vmem>>, %arg2: memref<128x128xf32, #tpu.memory_space<vmem>>, %arg3: memref<1x128xf32, #tpu.memory_space<vmem>>, %arg4: memref<128x128xf32, #tpu.memory_space<vmem>>, %arg5: memref<1x128xf32, #tpu.memory_space<vmem>>, %arg6: memref<128x128xf32, #tpu.memory_space<vmem>>, %arg7: memref<1x128xf32, #tpu.memory_space<vmem>>, %arg8: memref<8x128xf32, #tpu.memory_space<vmem>>, %arg9: memref<1x1x128xf32, #tpu.memory_space<vmem>>, %arg10: memref<1x1x128xf32, #tpu.memory_space<vmem>>) attributes {dimension_semantics = [#tpu.dimension_semantics<parallel>], iteration_bounds = array<i64: 1>, scalar_prefetch = 0 : i64, scratch_operands = 0 : i64, tpu.core_type = #tpu.core_type<tc>, window_params = [{transform_indices = @transform_0, window_bounds = array<i64: 8, 128>}, {pipeline_mode = #tpu.pipeline_mode<synchronous>, transform_indices = @transform_1, window_bounds = array<i64: 128, 128>}, {pipeline_mode = #tpu.pipeline_mode<synchronous>, transform_indices = @transform_2, window_bounds = array<i64: 1, 128>}, {pipeline_mode = #tpu.pipeline_mode<synchronous>, transform_indices = @transform_3, window_bounds = array<i64: 128, 128>}, {pipeline_mode = #tpu.pipeline_mode<synchronous>, transform_indices = @transform_4, window_bounds = array<i64: 1, 128>}, {pipeline_mode = #tpu.pipeline_mode<synchronous>, transform_indices = @transform_5, window_bounds = array<i64: 128, 128>}, {pipeline_mode = #tpu.pipeline_mode<synchronous>, transform_indices = @transform_6, window_bounds = array<i64: 1, 128>}, {transform_indices = @transform_7, window_bounds = array<i64: 8, 128>}, {transform_indices = @transform_8, window_bounds = array<i64: 1, 1, 128>}, {transform_indices = @transform_9, window_bounds = array<i64: 1, 1, 128>}]} {
    %c0 = arith.constant 0 : index
    %c0_0 = arith.constant 0 : index
    %0 = vector.load %arg3[%c0, %c0_0] : memref<1x128xf32, #tpu.memory_space<vmem>>, vector<1x128xf32>
    %c0_1 = arith.constant 0 : index
    %c0_2 = arith.constant 0 : index
    %1 = vector.load %arg5[%c0_1, %c0_2] : memref<1x128xf32, #tpu.memory_space<vmem>>, vector<1x128xf32>
    %c0_3 = arith.constant 0 : index
    %c0_4 = arith.constant 0 : index
    %2 = vector.load %arg7[%c0_3, %c0_4] : memref<1x128xf32, #tpu.memory_space<vmem>>, vector<1x128xf32>
    %c0_5 = arith.constant 0 : index
    %c0_6 = arith.constant 0 : index
    %3 = vector.load %arg1[%c0_5, %c0_6] : memref<8x128xf32, #tpu.memory_space<vmem>>, vector<8x128xf32>
    %c0_7 = arith.constant 0 : index
    %c0_8 = arith.constant 0 : index
    %4 = vector.load %arg2[%c0_7, %c0_8] : memref<128x128xf32, #tpu.memory_space<vmem>>, vector<128x128xf32>
    %cst = arith.constant dense<0.000000e+00> : vector<8x128xf32>
    %5 = tpu.matmul %3, %4, %cst {dimension_numbers = #tpu.dot_dimension_numbers<[1], [0], [0], [1], [0, 0, 1, 1], [], []>} : vector<8x128xf32>, vector<128x128xf32>, vector<8x128xf32> -> vector<8x128xf32>
    %6 = vector.broadcast %0 : vector<1x128xf32> to vector<8x128xf32>
    %7 = arith.addf %5, %6 : vector<8x128xf32>
    %cst_9 = arith.constant 0.000000e+00 : f32
    %8 = vector.broadcast %cst_9 : f32 to vector<8x128xf32>
    %9 = arith.maximumf %7, %8 : vector<8x128xf32>
    %10 = math.absf %7 : vector<8x128xf32>
    %cst_10 = arith.constant 0.000000e+00 : f32
    %11 = vector.broadcast %cst_10 : f32 to vector<8x128xf32>
    %12 = arith.subf %11, %10 : vector<8x128xf32>
    %13 = math.exp %12 : vector<8x128xf32>
    %14 = math.log1p %13 : vector<8x128xf32>
    %15 = arith.addf %9, %14 : vector<8x128xf32>
    %c0_11 = arith.constant 0 : index
    %c0_12 = arith.constant 0 : index
    %16 = vector.load %arg4[%c0_11, %c0_12] : memref<128x128xf32, #tpu.memory_space<vmem>>, vector<128x128xf32>
    %cst_13 = arith.constant dense<0.000000e+00> : vector<8x128xf32>
    %17 = tpu.matmul %15, %16, %cst_13 {dimension_numbers = #tpu.dot_dimension_numbers<[1], [0], [0], [1], [0, 0, 1, 1], [], []>} : vector<8x128xf32>, vector<128x128xf32>, vector<8x128xf32> -> vector<8x128xf32>
    %18 = vector.broadcast %1 : vector<1x128xf32> to vector<8x128xf32>
    %19 = arith.addf %17, %18 : vector<8x128xf32>
    %cst_14 = arith.constant 0.000000e+00 : f32
    %20 = vector.broadcast %cst_14 : f32 to vector<8x128xf32>
    %21 = arith.maximumf %19, %20 : vector<8x128xf32>
    %22 = math.absf %19 : vector<8x128xf32>
    %cst_15 = arith.constant 0.000000e+00 : f32
    %23 = vector.broadcast %cst_15 : f32 to vector<8x128xf32>
    %24 = arith.subf %23, %22 : vector<8x128xf32>
    %25 = math.exp %24 : vector<8x128xf32>
    %26 = math.log1p %25 : vector<8x128xf32>
    %27 = arith.addf %21, %26 : vector<8x128xf32>
    %c0_16 = arith.constant 0 : index
    %c0_17 = arith.constant 0 : index
    %28 = vector.load %arg6[%c0_16, %c0_17] : memref<128x128xf32, #tpu.memory_space<vmem>>, vector<128x128xf32>
    %cst_18 = arith.constant dense<0.000000e+00> : vector<8x128xf32>
    %29 = tpu.matmul %27, %28, %cst_18 {dimension_numbers = #tpu.dot_dimension_numbers<[1], [0], [0], [1], [0, 0, 1, 1], [], []>} : vector<8x128xf32>, vector<128x128xf32>, vector<8x128xf32> -> vector<8x128xf32>
    %30 = vector.broadcast %2 : vector<1x128xf32> to vector<8x128xf32>
    %31 = arith.addf %29, %30 : vector<8x128xf32>
    %c0_19 = arith.constant 0 : index
    %c0_20 = arith.constant 0 : index
    %32 = vector.load %arg8[%c0_19, %c0_20] : memref<8x128xf32, #tpu.memory_space<vmem>>, vector<8x128xf32>
    tpu.vector_store %arg8[%c0_19, %c0_20], %31 {strides = array<i32>} : memref<8x128xf32, #tpu.memory_space<vmem>>, vector<8x128xf32>,
    %33 = tpu.iota {dimensions = array<i32: 0>} : vector<8x128xi32>
    %c8_i32 = arith.constant 8 : i32
    %34 = arith.muli %arg0, %c8_i32 : i32
    %35 = vector.broadcast %34 : i32 to vector<8x128xi32>
    %36 = arith.addi %33, %35 : vector<8x128xi32>
    %c0_i32 = arith.constant 0 : i32
    %37 = vector.broadcast %c0_i32 : i32 to vector<8x128xi32>
    %38 = arith.addi %36, %37 : vector<8x128xi32>
    %c8_i32_21 = arith.constant 8 : i32
    %39 = vector.broadcast %c8_i32_21 : i32 to vector<8x128xi32>
    %40 = arith.cmpi slt, %38, %39 : vector<8x128xi32>
    %cst_22 = arith.constant 0.000000e+00 : f32
    %41 = vector.broadcast %cst_22 : f32 to vector<8x128xf32>
    %42 = arith.select %40, %31, %41 : vector<8x128xi1>, vector<8x128xf32>
    %cst_23 = arith.constant dense<0.000000e+00> : vector<128xf32>
    %43 = vector.multi_reduction <add>, %42, %cst_23 [0] : vector<8x128xf32> to vector<128xf32>
    %44 = vector.shape_cast %43 : vector<128xf32> to vector<1x128xf32>
    %45 = arith.mulf %42, %42 : vector<8x128xf32>
    %cst_24 = arith.constant dense<0.000000e+00> : vector<128xf32>
    %46 = vector.multi_reduction <add>, %45, %cst_24 [0] : vector<8x128xf32> to vector<128xf32>
    %47 = vector.shape_cast %46 : vector<128xf32> to vector<1x128xf32>
    %48 = vector.shape_cast %44 : vector<1x128xf32> to vector<1x1x128xf32>
    %c0_25 = arith.constant 0 : index
    %c0_26 = arith.constant 0 : index
    %c0_27 = arith.constant 0 : index
    %49 = vector.load %arg9[%c0_25, %c0_26, %c0_27] : memref<1x1x128xf32, #tpu.memory_space<vmem>>, vector<1x1x128xf32>
    tpu.vector_store %arg9[%c0_25, %c0_26, %c0_27], %48 {strides = array<i32>} : memref<1x1x128xf32, #tpu.memory_space<vmem>>, vector<1x1x128xf32>,
    %50 = vector.shape_cast %47 : vector<1x128xf32> to vector<1x1x128xf32>
    %c0_28 = arith.constant 0 : index
    %c0_29 = arith.constant 0 : index
    %c0_30 = arith.constant 0 : index
    %51 = vector.load %arg10[%c0_28, %c0_29, %c0_30] : memref<1x1x128xf32, #tpu.memory_space<vmem>>, vector<1x1x128xf32>
    tpu.vector_store %arg10[%c0_28, %c0_29, %c0_30], %50 {strides = array<i32>} : memref<1x1x128xf32, #tpu.memory_space<vmem>>, vector<1x1x128xf32>,
    return
  }
  func.func @transform_0(%arg0: i32) -> (i32, i32) {
    %c0_i32 = arith.constant 0 : i32
    %c0_i32_0 = arith.constant 0 : i32
    return %arg0, %c0_i32 : i32, i32
  }
  func.func @transform_1(%arg0: i32) -> (i32, i32) {
    %c0_i32 = arith.constant 0 : i32
    %c0_i32_0 = arith.constant 0 : i32
    %c0_i32_1 = arith.constant 0 : i32
    return %c0_i32, %c0_i32_0 : i32, i32
  }
  func.func @transform_2(%arg0: i32) -> (i32, i32) {
    %c0_i32 = arith.constant 0 : i32
    %c0_i32_0 = arith.constant 0 : i32
    %c0_i32_1 = arith.constant 0 : i32
    return %c0_i32, %c0_i32_0 : i32, i32
  }
  func.func @transform_3(%arg0: i32) -> (i32, i32) {
    %c0_i32 = arith.constant 0 : i32
    %c0_i32_0 = arith.constant 0 : i32
    %c0_i32_1 = arith.constant 0 : i32
    return %c0_i32, %c0_i32_0 : i32, i32
  }
  func.func @transform_4(%arg0: i32) -> (i32, i32) {
    %c0_i32 = arith.constant 0 : i32
    %c0_i32_0 = arith.constant 0 : i32
    %c0_i32_1 = arith.constant 0 : i32
    return %c0_i32, %c0_i32_0 : i32, i32
  }
  func.func @transform_5(%arg0: i32) -> (i32, i32) {
    %c0_i32 = arith.constant 0 : i32
    %c0_i32_0 = arith.constant 0 : i32
    %c0_i32_1 = arith.constant 0 : i32
    return %c0_i32, %c0_i32_0 : i32, i32
  }
  func.func @transform_6(%arg0: i32) -> (i32, i32) {
    %c0_i32 = arith.constant 0 : i32
    %c0_i32_0 = arith.constant 0 : i32
    %c0_i32_1 = arith.constant 0 : i32
    return %c0_i32, %c0_i32_0 : i32, i32
  }
  func.func @transform_7(%arg0: i32) -> (i32, i32) {
    %c0_i32 = arith.constant 0 : i32
    %c0_i32_0 = arith.constant 0 : i32
    return %arg0, %c0_i32 : i32, i32
  }
  func.func @transform_8(%arg0: i32) -> (i32, i32, i32) {
    %c0_i32 = arith.constant 0 : i32
    %c0_i32_0 = arith.constant 0 : i32
    %c0_i32_1 = arith.constant 0 : i32
    return %arg0, %c0_i32, %c0_i32_0 : i32, i32, i32
  }
  func.func @transform_9(%arg0: i32) -> (i32, i32, i32) {
    %c0_i32 = arith.constant 0 : i32
    %c0_i32_0 = arith.constant 0 : i32
    %c0_i32_1 = arith.constant 0 : i32
    return %arg0, %c0_i32, %c0_i32_0 : i32, i32, i32
  }
}

</mosaic_0001>

<llo_original>
// kernel: tpu_custom_call.1
$region0: #{tpu_custom_call.1}
  #allocation0 [shape = 'u32[]', space=smem, size = 0x4, offset = 0x4, fixed_abs, tag = 'smem constant byte address 0x4 - core index']
  #allocation1 [shape = 'u32[144,128]{1,0:T(1,128)}', space=vmem, size = 0x12000, scoped, tag = 'internal scratch']
  %s0 = inlined_call_operand.hbm [shape: f32[8,128], index: 0, kind: input, shape index: {}]
  %s1 = inlined_call_operand.hbm [shape: f32[128,128], index: 1, kind: input, shape index: {}]
  %s2 = inlined_call_operand.vmem [shape: f32[1,128], index: 2, kind: input, shape index: {}]
  %s3 = inlined_call_operand.hbm [shape: f32[128,128], index: 3, kind: input, shape index: {}]
  %s4 = inlined_call_operand.vmem [shape: f32[1,128], index: 4, kind: input, shape index: {}]
  %s5 = inlined_call_operand.hbm [shape: f32[128,128], index: 5, kind: input, shape index: {}]
  %s6 = inlined_call_operand.vmem [shape: f32[1,128], index: 6, kind: input, shape index: {}]
  %s7 = inlined_call_operand.hbm [shape: f32[8,128], index: 7, kind: output, shape index: {0}]
  %s8 = inlined_call_operand.hbm [shape: f32[1,1,128], index: 8, kind: output, shape index: {1}]
  %s9 = inlined_call_operand.hbm [shape: f32[1,1,128], index: 9, kind: output, shape index: {2}]
  %10 = xla_tuple %s7, %s8, %s9
  %s11 = sld [smem:[#allocation0]]
  $region70: #{tpu_custom_call.1} parent=0
    _
  %s13 = ssub.s32 1, %s11
  %s14 = scalar_select 0, %s13, %s11
  $region1: #{tpu_custom_call.1} parent=0
    #allocation2 [shape = 'u8[4096]{0}', space=vmem, size = 0x1000, scoped, tag = 'input window, operand 0, single buffered']
    #allocation3 [shape = 's32[1]{0}', space=sflag, size = 0x4, scoped, tag = 'scoped memory for tpu_custom_call.1']
    #allocation4 [shape = 's32[1]{0}', space=sflag, size = 0x4, scoped, tag = 'scoped memory for tpu_custom_call.1']
    #allocation5 [shape = 'u8[65536]{0}', space=vmem, size = 0x10000, scoped, tag = 'input window, operand 1, single buffered']
    #allocation6 [shape = 's32[1]{0}', space=sflag, size = 0x4, scoped, tag = 'scoped memory for tpu_custom_call.1']
    #allocation7 [shape = 'u8[65536]{0}', space=vmem, size = 0x10000, scoped, tag = 'input window, operand 3, single buffered']
    #allocation8 [shape = 'u8[65536]{0}', space=vmem, size = 0x10000, scoped, tag = 'input window, operand 5, single buffered']
    #allocation9 [shape = 's32[1]{0}', space=sflag, size = 0x4, scoped, tag = 'scoped memory for tpu_custom_call.1']
    #allocation10 [shape = 'u8[4096]{0}', space=vmem, size = 0x1000, scoped, tag = 'output window, operand 0, single buffered']
    #allocation11 [shape = 'u8[512]{0}', space=vmem, size = 0x400, scoped, tag = 'output window, operand 1, single buffered']
    #allocation12 [shape = 's32[1]{0}', space=sflag, size = 0x4, scoped, tag = 'scoped memory for tpu_custom_call.1']
    #allocation13 [shape = 'u8[512]{0}', space=vmem, size = 0x400, scoped, tag = 'output window, operand 2, single buffered']
    %15 = vsyncpa [#allocation3], 0
    %16 = vsyncpa [#allocation6], 0
    %17 = vsyncpa [#allocation9], 0
    %18 = vsyncpa [#allocation4], 0
    %19 = vsyncpa [#allocation12], 0
    // Predicated region
    $region2: #{tpu_custom_call.1} parent=1 // pred_check
      _
    $region3: #{tpu_custom_call.1} parent=1 // pred_check_branch
      %21 = sbr.rel (0) target = $region5
    $region4: #{tpu_custom_call.1} parent=1 // pred_region
      %s23 = ssub.s32 128, 128
      %24 = vsyncadd [#allocation3], %s23
      %s26 = sshll.u32 [#allocation2], 4
      %s27 = int_to_ptr.vmem [resolvable:$true] %s26
      %29 = dma.hbm_to_vmem [thread:$0]  %s0, 128, %s27, [#allocation3]
    $region5: #{tpu_custom_call.1} parent=1 // pred_fallthru
      _
    // Predicated region
    $region6: #{tpu_custom_call.1} parent=1 // pred_check
      _
    $region7: #{tpu_custom_call.1} parent=1 // pred_check_branch
      %31 = sbr.rel (0) target = $region9
    $region8: #{tpu_custom_call.1} parent=1 // pred_region
      %s33 = ssub.s32 2048, 2048
      %34 = vsyncadd [#allocation6], %s33
      %s35 = sshll.u32 [#allocation5], 4
      %s36 = int_to_ptr.vmem [resolvable:$true] %s35
      %41 = dma.hbm_to_vmem [thread:$0]  %s1, 2048, %s36, [#allocation6], 128, 128, 8
    $region9: #{tpu_custom_call.1} parent=1 // pred_fallthru
      _
    // Predicated region
    $region10: #{tpu_custom_call.1} parent=1 // pred_check
      _
    $region11: #{tpu_custom_call.1} parent=1 // pred_check_branch
      %43 = sbr.rel (0) target = $region13
    $region12: #{tpu_custom_call.1} parent=1 // pred_region
      _
    $region13: #{tpu_custom_call.1} parent=1 // pred_fallthru
      _
    // Predicated region
    $region14: #{tpu_custom_call.1} parent=1 // pred_check
      _
    $region15: #{tpu_custom_call.1} parent=1 // pred_check_branch
      %45 = sbr.rel (0) target = $region17
    $region16: #{tpu_custom_call.1} parent=1 // pred_region
      %s47 = ssub.s32 2048, 2048
      %48 = vsyncadd [#allocation6], %s47
      %s49 = sshll.u32 [#allocation7], 4
      %s50 = int_to_ptr.vmem [resolvable:$true] %s49
      %55 = dma.hbm_to_vmem [thread:$0]  %s3, 2048, %s50, [#allocation6], 128, 128, 8
    $region17: #{tpu_custom_call.1} parent=1 // pred_fallthru
      _
    // Predicated region
    $region18: #{tpu_custom_call.1} parent=1 // pred_check
      _
    $region19: #{tpu_custom_call.1} parent=1 // pred_check_branch
      %57 = sbr.rel (0) target = $region21
    $region20: #{tpu_custom_call.1} parent=1 // pred_region
      _
    $region21: #{tpu_custom_call.1} parent=1 // pred_fallthru
      _
    // Predicated region
    $region22: #{tpu_custom_call.1} parent=1 // pred_check
      _
    $region23: #{tpu_custom_call.1} parent=1 // pred_check_branch
      %59 = sbr.rel (0) target = $region25
    $region24: #{tpu_custom_call.1} parent=1 // pred_region
      %s61 = ssub.s32 2048, 2048
      %62 = vsyncadd [#allocation9], %s61
      %s63 = sshll.u32 [#allocation8], 4
      %s64 = int_to_ptr.vmem [resolvable:$true] %s63
      %69 = dma.hbm_to_vmem [thread:$0]  %s5, 2048, %s64, [#allocation9], 128, 128, 8
    $region25: #{tpu_custom_call.1} parent=1 // pred_fallthru
      _
    // Predicated region
    $region26: #{tpu_custom_call.1} parent=1 // pred_check
      _
    $region27: #{tpu_custom_call.1} parent=1 // pred_check_branch
      %71 = sbr.rel (0) target = $region29
    $region28: #{tpu_custom_call.1} parent=1 // pred_region
      _
    $region29: #{tpu_custom_call.1} parent=1 // pred_fallthru
      _
    // Predicated region
    $region30: #{tpu_custom_call.1} parent=1 // pred_check
      _
    $region31: #{tpu_custom_call.1} parent=1 // pred_check_branch
      %73 = sbr.rel (0) target = $region33
    $region32: #{tpu_custom_call.1} parent=1 // pred_region
      %74 = dma.done [#allocation3], 128
    $region33: #{tpu_custom_call.1} parent=1 // pred_fallthru
      _
    // Predicated region
    $region34: #{tpu_custom_call.1} parent=1 // pred_check
      _
    $region35: #{tpu_custom_call.1} parent=1 // pred_check_branch
      %76 = sbr.rel (0) target = $region37
    $region36: #{tpu_custom_call.1} parent=1 // pred_region
      %77 = dma.done [#allocation6], 2048
    $region37: #{tpu_custom_call.1} parent=1 // pred_fallthru
      _
    // Predicated region
    $region38: #{tpu_custom_call.1} parent=1 // pred_check
      _
    $region39: #{tpu_custom_call.1} parent=1 // pred_check_branch
      %79 = sbr.rel (0) target = $region41
    $region40: #{tpu_custom_call.1} parent=1 // pred_region
      %80 = dma.done [#allocation6], 2048
    $region41: #{tpu_custom_call.1} parent=1 // pred_fallthru
      _
    // Predicated region
    $region42: #{tpu_custom_call.1} parent=1 // pred_check
      _
    $region43: #{tpu_custom_call.1} parent=1 // pred_check_branch
      %82 = sbr.rel (0) target = $region45
    $region44: #{tpu_custom_call.1} parent=1 // pred_region
      %83 = dma.done [#allocation9], 2048
    $region45: #{tpu_custom_call.1} parent=1 // pred_fallthru
      _
    %v84 = vld [vmem:[%s2] sm:$0x1]
    %v85 = vld [vmem:[%s4] sm:$0x1]
    %v86 = vld [vmem:[%s6] sm:$0x1]
    %v87 = vld [vmem:[#allocation2] sm:$0xff]
    %v88 = vld [vmem:[#allocation5] sm:$0xff]
    %v89 = vld [vmem:[#allocation5 + $0x8] sm:$0xff]
    %v90 = vld [vmem:[#allocation5 + $0x10] sm:$0xff]
    %v91 = vld [vmem:[#allocation5 + $0x18] sm:$0xff]
    %v92 = vld [vmem:[#allocation5 + $0x20] sm:$0xff]
    %v93 = vld [vmem:[#allocation5 + $0x28] sm:$0xff]
    %v94 = vld [vmem:[#allocation5 + $0x30] sm:$0xff]
    %v95 = vld [vmem:[#allocation5 + $0x38] sm:$0xff]
    %v96 = vld [vmem:[#allocation5 + $0x40] sm:$0xff]
    %v97 = vld [vmem:[#allocation5 + $0x48] sm:$0xff]
    %v98 = vld [vmem:[#allocation5 + $0x50] sm:$0xff]
    %v99 = vld [vmem:[#allocation5 + $0x58] sm:$0xff]
    %v100 = vld [vmem:[#allocation5 + $0x60] sm:$0xff]
    %v101 = vld [vmem:[#allocation5 + $0x68] sm:$0xff]
    %v102 = vld [vmem:[#allocation5 + $0x70] sm:$0xff]
    %v103 = vld [vmem:[#allocation5 + $0x78] sm:$0xff]
    %v105 = vlaneseq
    %v106 = vshrl.u32 %v105, 7
    %v107 = vsub.s32 0, %v106
    %v108 = vrot.slane %v84, %v107
    %110 = vmatprep.subr.mxu0 0.0
    %111 = vmatpush1.msra.mxu0 %v88
    %112 = vmatprep.subr.mxu0 0.0
    %113 = vmatpush1.msra.mxu0 %v89
    %114 = vmatprep.subr.mxu0 0.0
    %115 = vmatpush1.msra.mxu0 %v90
    %116 = vmatprep.subr.mxu0 0.0
    %117 = vmatpush1.msra.mxu0 %v91
    %118 = vmatprep.subr.mxu0 0.0
    %119 = vmatpush1.msra.mxu0 %v92
    %120 = vmatprep.subr.mxu0 0.0
    %121 = vmatpush1.msra.mxu0 %v93
    %122 = vmatprep.subr.mxu0 0.0
    %123 = vmatpush1.msra.mxu0 %v94
    %124 = vmatprep.subr.mxu0 0.0
    %125 = vmatpush1.msra.mxu0 %v95
    %126 = vmatprep.subr.mxu0 0.0
    %127 = vmatpush1.msra.mxu0 %v96
    %128 = vmatprep.subr.mxu0 0.0
    %129 = vmatpush1.msra.mxu0 %v97
    %130 = vmatprep.subr.mxu0 0.0
    %131 = vmatpush1.msra.mxu0 %v98
    %132 = vmatprep.subr.mxu0 0.0
    %133 = vmatpush1.msra.mxu0 %v99
    %134 = vmatprep.subr.mxu0 0.0
    %135 = vmatpush1.msra.mxu0 %v100
    %136 = vmatprep.subr.mxu0 0.0
    %137 = vmatpush1.msra.mxu0 %v101
    %138 = vmatprep.subr.mxu0 0.0
    %139 = vmatpush1.msra.mxu0 %v102
    %140 = vmatprep.subr.mxu0 0.0
    %141 = vmatpush1.msra.mxu0 %v103
    %142 = vmatprep.subr.mxu0 0.0
    %143 = vmatpush1.msra.mxu0 0.0
    %144 = vmatprep.subr.mxu0 0.0
    %145 = vmatpush1.msra.mxu0 0.0
    %146 = vmatprep.subr.mxu0 0.0
    %147 = vmatpush1.msra.mxu0 0.0
    %148 = vmatprep.subr.mxu0 0.0
    %149 = vmatpush1.msra.mxu0 0.0
    %150 = vmatprep.subr.mxu0 0.0
    %151 = vmatpush1.msra.mxu0 0.0
    %152 = vmatprep.subr.mxu0 0.0
    %153 = vmatpush1.msra.mxu0 0.0
    %154 = vmatprep.subr.mxu0 0.0
    %155 = vmatpush1.msra.mxu0 0.0
    %156 = vmatprep.subr.mxu0 0.0
    %157 = vmatpush1.msra.mxu0 0.0
    %158 = vmatprep.subr.mxu0 0.0
    %159 = vmatpush1.msra.mxu0 0.0
    %160 = vmatprep.subr.mxu0 0.0
    %161 = vmatpush1.msra.mxu0 0.0
    %162 = vmatprep.subr.mxu0 0.0
    %163 = vmatpush1.msra.mxu0 0.0
    %164 = vmatprep.subr.mxu0 0.0
    %165 = vmatpush1.msra.mxu0 0.0
    %166 = vmatprep.subr.mxu0 0.0
    %167 = vmatpush1.msra.mxu0 0.0
    %168 = vmatprep.subr.mxu0 0.0
    %169 = vmatpush1.msra.mxu0 0.0
    %170 = vmatprep.subr.mxu0 0.0
    %171 = vmatpush1.msra.mxu0 0.0
    %172 = vmatprep.subr.mxu0 0.0
    %173 = vmatpush1.msra.mxu0 0.0
    %174 = vmatprep.mubr.f32.mxu0 0.0
    %175 = vmatmul.mubr.f32.gmra.mrb[0].mxu0 %v87
    %v176 = vpop.f32.mrb[0].mxu0
    %v177 = vadd.f32 %v108, %v176
    %v178 = vpop.f32.mrb[0].mxu0
    %179 = vdwg.mxu0
    %v180 = vmax.f32 %v177, 0.0
    %v181 = vand.u32 2147483647, %v177
    %v182 = vsub.f32 0.0, %v181
    %v183 = vmul.f32 %v182, 1.442695
    %v184 = vpow.pop %v183
    %v185 = vadd.f32 %v184, 1.0
    %v186 = vlog2.pop %v185
    %v187 = vmul.f32 %v186, 0.6931472
    %v188 = vmul.f32 -0.5, %v184
    %v189 = vadd.f32 %v188, 1.0
    %v190 = vmul.f32 %v189, %v184
    %v191 = vand.u32 2147483647, %v184
    %vm192 = vcmp.lt.f32.partialorder %v191, 0.0004427343
    %v193 = vsel %vm192, %v190, %v187
    %v194 = vadd.f32 %v180, %v193
    %v195 = vld [vmem:[#allocation7] sm:$0xff]
    %v196 = vld [vmem:[#allocation7 + $0x8] sm:$0xff]
    %v197 = vld [vmem:[#allocation7 + $0x10] sm:$0xff]
    %v198 = vld [vmem:[#allocation7 + $0x18] sm:$0xff]
    %v199 = vld [vmem:[#allocation7 + $0x20] sm:$0xff]
    %v200 = vld [vmem:[#allocation7 + $0x28] sm:$0xff]
    %v201 = vld [vmem:[#allocation7 + $0x30] sm:$0xff]
    %v202 = vld [vmem:[#allocation7 + $0x38] sm:$0xff]
    %v203 = vld [vmem:[#allocation7 + $0x40] sm:$0xff]
    %v204 = vld [vmem:[#allocation7 + $0x48] sm:$0xff]
    %v205 = vld [vmem:[#allocation7 + $0x50] sm:$0xff]
    %v206 = vld [vmem:[#allocation7 + $0x58] sm:$0xff]
    %v207 = vld [vmem:[#allocation7 + $0x60] sm:$0xff]
    %v208 = vld [vmem:[#allocation7 + $0x68] sm:$0xff]
    %v209 = vld [vmem:[#allocation7 + $0x70] sm:$0xff]
    %v210 = vld [vmem:[#allocation7 + $0x78] sm:$0xff]
    %v212 = vlaneseq
    %v213 = vshrl.u32 %v212, 7
    %v214 = vsub.s32 0, %v213
    %v215 = vrot.slane %v85, %v214
    %217 = vmatprep.subr.mxu0 0.0
    %218 = vmatpush1.msra.mxu0 %v195
    %219 = vmatprep.subr.mxu0 0.0
    %220 = vmatpush1.msra.mxu0 %v196
    %221 = vmatprep.subr.mxu0 0.0
    %222 = vmatpush1.msra.mxu0 %v197
    %223 = vmatprep.subr.mxu0 0.0
    %224 = vmatpush1.msra.mxu0 %v198
    %225 = vmatprep.subr.mxu0 0.0
    %226 = vmatpush1.msra.mxu0 %v199
    %227 = vmatprep.subr.mxu0 0.0
    %228 = vmatpush1.msra.mxu0 %v200
    %229 = vmatprep.subr.mxu0 0.0
    %230 = vmatpush1.msra.mxu0 %v201
    %231 = vmatprep.subr.mxu0 0.0
    %232 = vmatpush1.msra.mxu0 %v202
    %233 = vmatprep.subr.mxu0 0.0
    %234 = vmatpush1.msra.mxu0 %v203
    %235 = vmatprep.subr.mxu0 0.0
    %236 = vmatpush1.msra.mxu0 %v204
    %237 = vmatprep.subr.mxu0 0.0
    %238 = vmatpush1.msra.mxu0 %v205
    %239 = vmatprep.subr.mxu0 0.0
    %240 = vmatpush1.msra.mxu0 %v206
    %241 = vmatprep.subr.mxu0 0.0
    %242 = vmatpush1.msra.mxu0 %v207
    %243 = vmatprep.subr.mxu0 0.0
    %244 = vmatpush1.msra.mxu0 %v208
    %245 = vmatprep.subr.mxu0 0.0
    %246 = vmatpush1.msra.mxu0 %v209
    %247 = vmatprep.subr.mxu0 0.0
    %248 = vmatpush1.msra.mxu0 %v210
    %249 = vmatprep.subr.mxu0 0.0
    %250 = vmatpush1.msra.mxu0 0.0
    %251 = vmatprep.subr.mxu0 0.0
    %252 = vmatpush1.msra.mxu0 0.0
    %253 = vmatprep.subr.mxu0 0.0
    %254 = vmatpush1.msra.mxu0 0.0
    %255 = vmatprep.subr.mxu0 0.0
    %256 = vmatpush1.msra.mxu0 0.0
    %257 = vmatprep.subr.mxu0 0.0
    %258 = vmatpush1.msra.mxu0 0.0
    %259 = vmatprep.subr.mxu0 0.0
    %260 = vmatpush1.msra.mxu0 0.0
    %261 = vmatprep.subr.mxu0 0.0
    %262 = vmatpush1.msra.mxu0 0.0
    %263 = vmatprep.subr.mxu0 0.0
    %264 = vmatpush1.msra.mxu0 0.0
    %265 = vmatprep.subr.mxu0 0.0
    %266 = vmatpush1.msra.mxu0 0.0
    %267 = vmatprep.subr.mxu0 0.0
    %268 = vmatpush1.msra.mxu0 0.0
    %269 = vmatprep.subr.mxu0 0.0
    %270 = vmatpush1.msra.mxu0 0.0
    %271 = vmatprep.subr.mxu0 0.0
    %272 = vmatpush1.msra.mxu0 0.0
    %273 = vmatprep.subr.mxu0 0.0
    %274 = vmatpush1.msra.mxu0 0.0
    %275 = vmatprep.subr.mxu0 0.0
    %276 = vmatpush1.msra.mxu0 0.0
    %277 = vmatprep.subr.mxu0 0.0
    %278 = vmatpush1.msra.mxu0 0.0
    %279 = vmatprep.subr.mxu0 0.0
    %280 = vmatpush1.msra.mxu0 0.0
    %281 = vmatprep.mubr.f32.mxu0 0.0
    %282 = vmatmul.mubr.f32.gmra.mrb[0].mxu0 %v194
    %v283 = vpop.f32.mrb[0].mxu0
    %v284 = vadd.f32 %v215, %v283
    %v285 = vpop.f32.mrb[0].mxu0
    %286 = vdwg.mxu0
    %v287 = vmax.f32 %v284, 0.0
    %v288 = vand.u32 2147483647, %v284
    %v289 = vsub.f32 0.0, %v288
    %v290 = vmul.f32 %v289, 1.442695
    %v291 = vpow.pop %v290
    %v292 = vadd.f32 %v291, 1.0
    %v293 = vlog2.pop %v292
    %v294 = vmul.f32 %v293, 0.6931472
    %v295 = vmul.f32 -0.5, %v291
    %v296 = vadd.f32 %v295, 1.0
    %v297 = vmul.f32 %v296, %v291
    %v298 = vand.u32 2147483647, %v291
    %vm299 = vcmp.lt.f32.partialorder %v298, 0.0004427343
    %v300 = vsel %vm299, %v297, %v294
    %v301 = vadd.f32 %v287, %v300
    %v302 = vld [vmem:[#allocation8] sm:$0xff]
    %v303 = vld [vmem:[#allocation8 + $0x8] sm:$0xff]
    %v304 = vld [vmem:[#allocation8 + $0x10] sm:$0xff]
    %v305 = vld [vmem:[#allocation8 + $0x18] sm:$0xff]
    %v306 = vld [vmem:[#allocation8 + $0x20] sm:$0xff]
    %v307 = vld [vmem:[#allocation8 + $0x28] sm:$0xff]
    %v308 = vld [vmem:[#allocation8 + $0x30] sm:$0xff]
    %v309 = vld [vmem:[#allocation8 + $0x38] sm:$0xff]
    %v310 = vld [vmem:[#allocation8 + $0x40] sm:$0xff]
    %v311 = vld [vmem:[#allocation8 + $0x48] sm:$0xff]
    %v312 = vld [vmem:[#allocation8 + $0x50] sm:$0xff]
    %v313 = vld [vmem:[#allocation8 + $0x58] sm:$0xff]
    %v314 = vld [vmem:[#allocation8 + $0x60] sm:$0xff]
    %v315 = vld [vmem:[#allocation8 + $0x68] sm:$0xff]
    %v316 = vld [vmem:[#allocation8 + $0x70] sm:$0xff]
    %v317 = vld [vmem:[#allocation8 + $0x78] sm:$0xff]
    %v319 = vlaneseq
    %v320 = vshrl.u32 %v319, 7
    %v321 = vsub.s32 0, %v320
    %v322 = vrot.slane %v86, %v321
    %324 = vmatprep.subr.mxu0 0.0
    %325 = vmatpush1.msra.mxu0 %v302
    %326 = vmatprep.subr.mxu0 0.0
    %327 = vmatpush1.msra.mxu0 %v303
    %328 = vmatprep.subr.mxu0 0.0
    %329 = vmatpush1.msra.mxu0 %v304
    %330 = vmatprep.subr.mxu0 0.0
    %331 = vmatpush1.msra.mxu0 %v305
    %332 = vmatprep.subr.mxu0 0.0
    %333 = vmatpush1.msra.mxu0 %v306
    %334 = vmatprep.subr.mxu0 0.0
    %335 = vmatpush1.msra.mxu0 %v307
    %336 = vmatprep.subr.mxu0 0.0
    %337 = vmatpush1.msra.mxu0 %v308
    %338 = vmatprep.subr.mxu0 0.0
    %339 = vmatpush1.msra.mxu0 %v309
    %340 = vmatprep.subr.mxu0 0.0
    %341 = vmatpush1.msra.mxu0 %v310
    %342 = vmatprep.subr.mxu0 0.0
    %343 = vmatpush1.msra.mxu0 %v311
    %344 = vmatprep.subr.mxu0 0.0
    %345 = vmatpush1.msra.mxu0 %v312
    %346 = vmatprep.subr.mxu0 0.0
    %347 = vmatpush1.msra.mxu0 %v313
    %348 = vmatprep.subr.mxu0 0.0
    %349 = vmatpush1.msra.mxu0 %v314
    %350 = vmatprep.subr.mxu0 0.0
    %351 = vmatpush1.msra.mxu0 %v315
    %352 = vmatprep.subr.mxu0 0.0
    %353 = vmatpush1.msra.mxu0 %v316
    %354 = vmatprep.subr.mxu0 0.0
    %355 = vmatpush1.msra.mxu0 %v317
    %356 = vmatprep.subr.mxu0 0.0
    %357 = vmatpush1.msra.mxu0 0.0
    %358 = vmatprep.subr.mxu0 0.0
    %359 = vmatpush1.msra.mxu0 0.0
    %360 = vmatprep.subr.mxu0 0.0
    %361 = vmatpush1.msra.mxu0 0.0
    %362 = vmatprep.subr.mxu0 0.0
    %363 = vmatpush1.msra.mxu0 0.0
    %364 = vmatprep.subr.mxu0 0.0
    %365 = vmatpush1.msra.mxu0 0.0
    %366 = vmatprep.subr.mxu0 0.0
    %367 = vmatpush1.msra.mxu0 0.0
    %368 = vmatprep.subr.mxu0 0.0
    %369 = vmatpush1.msra.mxu0 0.0
    %370 = vmatprep.subr.mxu0 0.0
    %371 = vmatpush1.msra.mxu0 0.0
    %372 = vmatprep.subr.mxu0 0.0
    %373 = vmatpush1.msra.mxu0 0.0
    %374 = vmatprep.subr.mxu0 0.0
    %375 = vmatpush1.msra.mxu0 0.0
    %376 = vmatprep.subr.mxu0 0.0
    %377 = vmatpush1.msra.mxu0 0.0
    %378 = vmatprep.subr.mxu0 0.0
    %379 = vmatpush1.msra.mxu0 0.0
    %380 = vmatprep.subr.mxu0 0.0
    %381 = vmatpush1.msra.mxu0 0.0
    %382 = vmatprep.subr.mxu0 0.0
    %383 = vmatpush1.msra.mxu0 0.0
    %384 = vmatprep.subr.mxu0 0.0
    %385 = vmatpush1.msra.mxu0 0.0
    %386 = vmatprep.subr.mxu0 0.0
    %387 = vmatpush1.msra.mxu0 0.0
    %388 = vmatprep.mubr.f32.mxu0 0.0
    %389 = vmatmul.mubr.f32.gmra.mrb[0].mxu0 %v301
    %v390 = vpop.f32.mrb[0].mxu0
    %v391 = vadd.f32 %v322, %v390
    %v392 = vpop.f32.mrb[0].mxu0
    %393 = vdwg.mxu0
    %394 = vst [vmem:[#allocation10] sm:$0xff] %v391
    %v395 = vlaneseq
    %v396 = vshrl.u32 %v395, 7
    %s397 = smul.u32 0, 8
    %v398 = vstv %s397
    %v399 = vadd.s32 %v396, %v398
    %vm400 = vcmp.lt.s32.totalorder %v399, 8
    %v401 = vsel %vm400, %v391, 0.0
    %v402 = vrot.slane %v401, 4
    %v403 = vadd.f32 %v401, %v402
    %v404 = vrot.slane %v403, 2
    %v405 = vadd.f32 %v403, %v404
    %v406 = vrot.slane %v405, 1
    %v407 = vadd.f32 %v405, %v406
    %v408 = vmul.f32 %v401, %v401
    %v409 = vrot.slane %v408, 4
    %v410 = vadd.f32 %v408, %v409
    %v411 = vrot.slane %v410, 2
    %v412 = vadd.f32 %v410, %v411
    %v413 = vrot.slane %v412, 1
    %v414 = vadd.f32 %v412, %v413
    %415 = vst [vmem:[#allocation11] sm:$0x1] %v407
    %416 = vst [vmem:[#allocation13] sm:$0x1] %v414
    // Predicated region
    $region46: #{tpu_custom_call.1} parent=1 // pred_check
      _
    $region47: #{tpu_custom_call.1} parent=1 // pred_check_branch
      %418 = sbr.rel (0) target = $region49
    $region48: #{tpu_custom_call.1} parent=1 // pred_region
      %s420 = ssub.s32 128, 128
      %421 = vsyncadd [#allocation4], %s420
      %s423 = sshll.u32 [#allocation10], 4
      %s424 = int_to_ptr.vmem [resolvable:$true] %s423
      %426 = dma.vmem_to_hbm [thread:$0]  %s424, 128, %s7, [#allocation4]
    $region49: #{tpu_custom_call.1} parent=1 // pred_fallthru
      _
    // Predicated region
    $region50: #{tpu_custom_call.1} parent=1 // pred_check
      _
    $region51: #{tpu_custom_call.1} parent=1 // pred_check_branch
      %428 = sbr.rel (0) target = $region53
    $region52: #{tpu_custom_call.1} parent=1 // pred_region
      %s430 = ssub.s32 16, 16
      %431 = vsyncadd [#allocation12], %s430
      %s433 = sshll.u32 [#allocation11], 4
      %s434 = int_to_ptr.vmem [resolvable:$true] %s433
      %436 = dma.vmem_to_hbm [thread:$0]  %s434, 16, %s8, [#allocation12]
    $region53: #{tpu_custom_call.1} parent=1 // pred_fallthru
      _
    // Predicated region
    $region54: #{tpu_custom_call.1} parent=1 // pred_check
      _
    $region55: #{tpu_custom_call.1} parent=1 // pred_check_branch
      %438 = sbr.rel (0) target = $region57
    $region56: #{tpu_custom_call.1} parent=1 // pred_region
      %s440 = ssub.s32 16, 16
      %441 = vsyncadd [#allocation12], %s440
      %s443 = sshll.u32 [#allocation13], 4
      %s444 = int_to_ptr.vmem [resolvable:$true] %s443
      %446 = dma.vmem_to_hbm [thread:$0]  %s444, 16, %s9, [#allocation12]
    $region57: #{tpu_custom_call.1} parent=1 // pred_fallthru
      _
    // Predicated region
    $region58: #{tpu_custom_call.1} parent=1 // pred_check
      _
    $region59: #{tpu_custom_call.1} parent=1 // pred_check_branch
      %448 = sbr.rel (0) target = $region61
    $region60: #{tpu_custom_call.1} parent=1 // pred_region
      %449 = dma.done [#allocation4], 128
    $region61: #{tpu_custom_call.1} parent=1 // pred_fallthru
      _
    // Predicated region
    $region62: #{tpu_custom_call.1} parent=1 // pred_check
      _
    $region63: #{tpu_custom_call.1} parent=1 // pred_check_branch
      %451 = sbr.rel (0) target = $region65
    $region64: #{tpu_custom_call.1} parent=1 // pred_region
      %452 = dma.done [#allocation12], 16
    $region65: #{tpu_custom_call.1} parent=1 // pred_fallthru
      _
    // Predicated region
    $region66: #{tpu_custom_call.1} parent=1 // pred_check
      _
    $region67: #{tpu_custom_call.1} parent=1 // pred_check_branch
      %454 = sbr.rel (0) target = $region69
    $region68: #{tpu_custom_call.1} parent=1 // pred_region
      %455 = dma.done [#allocation12], 16
    $region69: #{tpu_custom_call.1} parent=1 // pred_fallthru
      _
    %456 = vsyncpa [#allocation3], 1
    %457 = vsyncpa [#allocation6], 1
    %458 = vsyncpa [#allocation9], 1
    %459 = vsyncpa [#allocation4], 1
    %460 = vsyncpa [#allocation12], 1

// kernel: tpu_custom_call.1
$region0: #{tpu_custom_call.1}
  #allocation0 [shape = 'u32[]', space=smem, size = 0x4, offset = 0x4, fixed_abs, tag = 'smem constant byte address 0x4 - core index']
  #allocation1 [shape = 'u32[144,128]{1,0:T(1,128)}', space=vmem, size = 0x12000, scoped, tag = 'internal scratch']
  %s0 = inlined_call_operand.hbm [shape: f32[8,128], index: 0, kind: input, shape index: {}]
  %s1 = inlined_call_operand.hbm [shape: f32[128,128], index: 1, kind: input, shape index: {}]
  %s2 = inlined_call_operand.vmem [shape: f32[1,128], index: 2, kind: input, shape index: {}]
  %s3 = inlined_call_operand.hbm [shape: f32[128,128], index: 3, kind: input, shape index: {}]
  %s4 = inlined_call_operand.vmem [shape: f32[1,128], index: 4, kind: input, shape index: {}]
  %s5 = inlined_call_operand.hbm [shape: f32[128,128], index: 5, kind: input, shape index: {}]
  %s6 = inlined_call_operand.vmem [shape: f32[1,128], index: 6, kind: input, shape index: {}]
  %s7 = inlined_call_operand.hbm [shape: f32[8,128], index: 7, kind: output, shape index: {0}]
  %s8 = inlined_call_operand.hbm [shape: f32[1,1,128], index: 8, kind: output, shape index: {1}]
  %s9 = inlined_call_operand.hbm [shape: f32[1,1,128], index: 9, kind: output, shape index: {2}]
  %10 = xla_tuple %s7, %s8, %s9
  %s11 = sld [smem:[#allocation0]]
  $region70: #{tpu_custom_call.1} parent=0
    _
  %s13 = ssub.s32 1, %s11
  %s14 = scalar_select 0, %s13, %s11
  $region1: #{tpu_custom_call.1} parent=0
    #allocation2 [shape = 'u8[4096]{0}', space=vmem, size = 0x1000, scoped, tag = 'input window, operand 0, single buffered']
    #allocation3 [shape = 's32[1]{0}', space=sflag, size = 0x4, scoped, tag = 'scoped memory for tpu_custom_call.1']
    #allocation4 [shape = 's32[1]{0}', space=sflag, size = 0x4, scoped, tag = 'scoped memory for tpu_custom_call.1']
    #allocation5 [shape = 'u8[65536]{0}', space=vmem, size = 0x10000, scoped, tag = 'input window, operand 1, single buffered']
    #allocation6 [shape = 's32[1]{0}', space=sflag, size = 0x4, scoped, tag = 'scoped memory for tpu_custom_call.1']
    #allocation7 [shape = 'u8[65536]{0}', space=vmem, size = 0x10000, scoped, tag = 'input window, operand 3, single buffered']
    #allocation8 [shape = 'u8[65536]{0}', space=vmem, size = 0x10000, scoped, tag = 'input window, operand 5, single buffered']
    #allocation9 [shape = 's32[1]{0}', space=sflag, size = 0x4, scoped, tag = 'scoped memory for tpu_custom_call.1']
    #allocation10 [shape = 'u8[4096]{0}', space=vmem, size = 0x1000, scoped, tag = 'output window, operand 0, single buffered']
    #allocation11 [shape = 'u8[512]{0}', space=vmem, size = 0x400, scoped, tag = 'output window, operand 1, single buffered']
    #allocation12 [shape = 's32[1]{0}', space=sflag, size = 0x4, scoped, tag = 'scoped memory for tpu_custom_call.1']
    #allocation13 [shape = 'u8[512]{0}', space=vmem, size = 0x400, scoped, tag = 'output window, operand 2, single buffered']
    %15 = vsyncpa [#allocation3], 0
    %16 = vsyncpa [#allocation6], 0
    %17 = vsyncpa [#allocation9], 0
    %18 = vsyncpa [#allocation4], 0
    %19 = vsyncpa [#allocation12], 0
    // Predicated region
    $region2: #{tpu_custom_call.1} parent=1 // pred_check
      _
    $region3: #{tpu_custom_call.1} parent=1 // pred_check_branch
      %21 = sbr.rel (0) target = $region5
    $region4: #{tpu_custom_call.1} parent=1 // pred_region
      %s23 = ssub.s32 128, 128
      %24 = vsyncadd [#allocation3], %s23
      %s26 = sshll.u32 [#allocation2], 4
      %s27 = int_to_ptr.vmem [resolvable:$true] %s26
      %29 = dma.hbm_to_vmem [thread:$0]  %s0, 128, %s27, [#allocation3]
    $region5: #{tpu_custom_call.1} parent=1 // pred_fallthru
      _
    // Predicated region
    $region6: #{tpu_custom_call.1} parent=1 // pred_check
      _
    $region7: #{tpu_custom_call.1} parent=1 // pred_check_branch
      %31 = sbr.rel (0) target = $region9
    $region8: #{tpu_custom_call.1} parent=1 // pred_region
      %s33 = ssub.s32 2048, 2048
      %34 = vsyncadd [#allocation6], %s33
      %s35 = sshll.u32 [#allocation5], 4
      %s36 = int_to_ptr.vmem [resolvable:$true] %s35
      %41 = dma.hbm_to_vmem [thread:$0]  %s1, 2048, %s36, [#allocation6], 128, 128, 8
    $region9: #{tpu_custom_call.1} parent=1 // pred_fallthru
      _
    // Predicated region
    $region10: #{tpu_custom_call.1} parent=1 // pred_check
      _
    $region11: #{tpu_custom_call.1} parent=1 // pred_check_branch
      %43 = sbr.rel (0) target = $region13
    $region12: #{tpu_custom_call.1} parent=1 // pred_region
      _
    $region13: #{tpu_custom_call.1} parent=1 // pred_fallthru
      _
    // Predicated region
    $region14: #{tpu_custom_call.1} parent=1 // pred_check
      _
    $region15: #{tpu_custom_call.1} parent=1 // pred_check_branch
      %45 = sbr.rel (0) target = $region17
    $region16: #{tpu_custom_call.1} parent=1 // pred_region
      %s47 = ssub.s32 2048, 2048
      %48 = vsyncadd [#allocation6], %s47
      %s49 = sshll.u32 [#allocation7], 4
      %s50 = int_to_ptr.vmem [resolvable:$true] %s49
      %55 = dma.hbm_to_vmem [thread:$0]  %s3, 2048, %s50, [#allocation6], 128, 128, 8
    $region17: #{tpu_custom_call.1} parent=1 // pred_fallthru
      _
    // Predicated region
    $region18: #{tpu_custom_call.1} parent=1 // pred_check
      _
    $region19: #{tpu_custom_call.1} parent=1 // pred_check_branch
      %57 = sbr.rel (0) target = $region21
    $region20: #{tpu_custom_call.1} parent=1 // pred_region
      _
    $region21: #{tpu_custom_call.1} parent=1 // pred_fallthru
      _
    // Predicated region
    $region22: #{tpu_custom_call.1} parent=1 // pred_check
      _
    $region23: #{tpu_custom_call.1} parent=1 // pred_check_branch
      %59 = sbr.rel (0) target = $region25
    $region24: #{tpu_custom_call.1} parent=1 // pred_region
      %s61 = ssub.s32 2048, 2048
      %62 = vsyncadd [#allocation9], %s61
      %s63 = sshll.u32 [#allocation8], 4
      %s64 = int_to_ptr.vmem [resolvable:$true] %s63
      %69 = dma.hbm_to_vmem [thread:$0]  %s5, 2048, %s64, [#allocation9], 128, 128, 8
    $region25: #{tpu_custom_call.1} parent=1 // pred_fallthru
      _
    // Predicated region
    $region26: #{tpu_custom_call.1} parent=1 // pred_check
      _
    $region27: #{tpu_custom_call.1} parent=1 // pred_check_branch
      %71 = sbr.rel (0) target = $region29
    $region28: #{tpu_custom_call.1} parent=1 // pred_region
      _
    $region29: #{tpu_custom_call.1} parent=1 // pred_fallthru
      _
    // Predicated region
    $region30: #{tpu_custom_call.1} parent=1 // pred_check
      _
    $region31: #{tpu_custom_call.1} parent=1 // pred_check_branch
      %73 = sbr.rel (0) target = $region33
    $region32: #{tpu_custom_call.1} parent=1 // pred_region
      %74 = dma.done [#allocation3], 128
    $region33: #{tpu_custom_call.1} parent=1 // pred_fallthru
      _
    // Predicated region
    $region34: #{tpu_custom_call.1} parent=1 // pred_check
      _
    $region35: #{tpu_custom_call.1} parent=1 // pred_check_branch
      %76 = sbr.rel (0) target = $region37
    $region36: #{tpu_custom_call.1} parent=1 // pred_region
      %77 = dma.done [#allocation6], 2048
    $region37: #{tpu_custom_call.1} parent=1 // pred_fallthru
      _
    // Predicated region
    $region38: #{tpu_custom_call.1} parent=1 // pred_check
      _
    $region39: #{tpu_custom_call.1} parent=1 // pred_check_branch
      %79 = sbr.rel (0) target = $region41
    $region40: #{tpu_custom_call.1} parent=1 // pred_region
      %80 = dma.done [#allocation6], 2048
    $region41: #{tpu_custom_call.1} parent=1 // pred_fallthru
      _
    // Predicated region
    $region42: #{tpu_custom_call.1} parent=1 // pred_check
      _
    $region43: #{tpu_custom_call.1} parent=1 // pred_check_branch
      %82 = sbr.rel (0) target = $region45
    $region44: #{tpu_custom_call.1} parent=1 // pred_region
      %83 = dma.done [#allocation9], 2048
    $region45: #{tpu_custom_call.1} parent=1 // pred_fallthru
      _
    %v84 = vld [vmem:[%s2] sm:$0x1]
    %v85 = vld [vmem:[%s4] sm:$0x1]
    %v86 = vld [vmem:[%s6] sm:$0x1]
    %v87 = vld [vmem:[#allocation2] sm:$0xff]
    %v88 = vld [vmem:[#allocation5] sm:$0xff]
    %v89 = vld [vmem:[#allocation5 + $0x8] sm:$0xff]
    %v90 = vld [vmem:[#allocation5 + $0x10] sm:$0xff]
    %v91 = vld [vmem:[#allocation5 + $0x18] sm:$0xff]
    %v92 = vld [vmem:[#allocation5 + $0x20] sm:$0xff]
    %v93 = vld [vmem:[#allocation5 + $0x28] sm:$0xff]
    %v94 = vld [vmem:[#allocation5 + $0x30] sm:$0xff]
    %v95 = vld [vmem:[#allocation5 + $0x38] sm:$0xff]
    %v96 = vld [vmem:[#allocation5 + $0x40] sm:$0xff]
    %v97 = vld [vmem:[#allocation5 + $0x48] sm:$0xff]
    %v98 = vld [vmem:[#allocation5 + $0x50] sm:$0xff]
    %v99 = vld [vmem:[#allocation5 + $0x58] sm:$0xff]
    %v100 = vld [vmem:[#allocation5 + $0x60] sm:$0xff]
    %v101 = vld [vmem:[#allocation5 + $0x68] sm:$0xff]
    %v102 = vld [vmem:[#allocation5 + $0x70] sm:$0xff]
    %v103 = vld [vmem:[#allocation5 + $0x78] sm:$0xff]
    %v105 = vlaneseq
    %v106 = vshrl.u32 %v105, 7
    %v107 = vsub.s32 0, %v106
    %v108 = vrot.slane %v84, %v107
    %110 = vmatprep.subr.mxu0 0.0
    %111 = vmatpush1.msra.mxu0 %v88
    %112 = vmatprep.subr.mxu0 0.0
    %113 = vmatpush1.msra.mxu0 %v89
    %114 = vmatprep.subr.mxu0 0.0
    %115 = vmatpush1.msra.mxu0 %v90
    %116 = vmatprep.subr.mxu0 0.0
    %117 = vmatpush1.msra.mxu0 %v91
    %118 = vmatprep.subr.mxu0 0.0
    %119 = vmatpush1.msra.mxu0 %v92
    %120 = vmatprep.subr.mxu0 0.0
    %121 = vmatpush1.msra.mxu0 %v93
    %122 = vmatprep.subr.mxu0 0.0
    %123 = vmatpush1.msra.mxu0 %v94
    %124 = vmatprep.subr.mxu0 0.0
    %125 = vmatpush1.msra.mxu0 %v95
    %126 = vmatprep.subr.mxu0 0.0
    %127 = vmatpush1.msra.mxu0 %v96
    %128 = vmatprep.subr.mxu0 0.0
    %129 = vmatpush1.msra.mxu0 %v97
    %130 = vmatprep.subr.mxu0 0.0
    %131 = vmatpush1.msra.mxu0 %v98
    %132 = vmatprep.subr.mxu0 0.0
    %133 = vmatpush1.msra.mxu0 %v99
    %134 = vmatprep.subr.mxu0 0.0
    %135 = vmatpush1.msra.mxu0 %v100
    %136 = vmatprep.subr.mxu0 0.0
    %137 = vmatpush1.msra.mxu0 %v101
    %138 = vmatprep.subr.mxu0 0.0
    %139 = vmatpush1.msra.mxu0 %v102
    %140 = vmatprep.subr.mxu0 0.0
    %141 = vmatpush1.msra.mxu0 %v103
    %142 = vmatprep.subr.mxu0 0.0
    %143 = vmatpush1.msra.mxu0 0.0
    %144 = vmatprep.subr.mxu0 0.0
    %145 = vmatpush1.msra.mxu0 0.0
    %146 = vmatprep.subr.mxu0 0.0
    %147 = vmatpush1.msra.mxu0 0.0
    %148 = vmatprep.subr.mxu0 0.0
    %149 = vmatpush1.msra.mxu0 0.0
    %150 = vmatprep.subr.mxu0 0.0
    %151 = vmatpush1.msra.mxu0 0.0
    %152 = vmatprep.subr.mxu0 0.0
    %153 = vmatpush1.msra.mxu0 0.0
    %154 = vmatprep.subr.mxu0 0.0
    %155 = vmatpush1.msra.mxu0 0.0
    %156 = vmatprep.subr.mxu0 0.0
    %157 = vmatpush1.msra.mxu0 0.0
    %158 = vmatprep.subr.mxu0 0.0
    %159 = vmatpush1.msra.mxu0 0.0
    %160 = vmatprep.subr.mxu0 0.0
    %161 = vmatpush1.msra.mxu0 0.0
    %162 = vmatprep.subr.mxu0 0.0
    %163 = vmatpush1.msra.mxu0 0.0
    %164 = vmatprep.subr.mxu0 0.0
    %165 = vmatpush1.msra.mxu0 0.0
    %166 = vmatprep.subr.mxu0 0.0
    %167 = vmatpush1.msra.mxu0 0.0
    %168 = vmatprep.subr.mxu0 0.0
    %169 = vmatpush1.msra.mxu0 0.0
    %170 = vmatprep.subr.mxu0 0.0
    %171 = vmatpush1.msra.mxu0 0.0
    %172 = vmatprep.subr.mxu0 0.0
    %173 = vmatpush1.msra.mxu0 0.0
    %174 = vmatprep.mubr.f32.mxu0 0.0
    %175 = vmatmul.mubr.f32.gmra.mrb[0].mxu0 %v87
    %v176 = vpop.f32.mrb[0].mxu0
    %v177 = vadd.f32 %v108, %v176
    %v178 = vpop.f32.mrb[0].mxu0
    %179 = vdwg.mxu0
    %v180 = vmax.f32 %v177, 0.0
    %v181 = vand.u32 2147483647, %v177
    %v182 = vsub.f32 0.0, %v181
    %v183 = vmul.f32 %v182, 1.442695
    %v184 = vpow.pop %v183
    %v185 = vadd.f32 %v184, 1.0
    %v186 = vlog2.pop %v185
    %v187 = vmul.f32 %v186, 0.6931472
    %v188 = vmul.f32 -0.5, %v184
    %v189 = vadd.f32 %v188, 1.0
    %v190 = vmul.f32 %v189, %v184
    %v191 = vand.u32 2147483647, %v184
    %vm192 = vcmp.lt.f32.partialorder %v191, 0.0004427343
    %v193 = vsel %vm192, %v190, %v187
    %v194 = vadd.f32 %v180, %v193
    %v195 = vld [vmem:[#allocation7] sm:$0xff]
    %v196 = vld [vmem:[#allocation7 + $0x8] sm:$0xff]
    %v197 = vld [vmem:[#allocation7 + $0x10] sm:$0xff]
    %v198 = vld [vmem:[#allocation7 + $0x18] sm:$0xff]
    %v199 = vld [vmem:[#allocation7 + $0x20] sm:$0xff]
    %v200 = vld [vmem:[#allocation7 + $0x28] sm:$0xff]
    %v201 = vld [vmem:[#allocation7 + $0x30] sm:$0xff]
    %v202 = vld [vmem:[#allocation7 + $0x38] sm:$0xff]
    %v203 = vld [vmem:[#allocation7 + $0x40] sm:$0xff]
    %v204 = vld [vmem:[#allocation7 + $0x48] sm:$0xff]
    %v205 = vld [vmem:[#allocation7 + $0x50] sm:$0xff]
    %v206 = vld [vmem:[#allocation7 + $0x58] sm:$0xff]
    %v207 = vld [vmem:[#allocation7 + $0x60] sm:$0xff]
    %v208 = vld [vmem:[#allocation7 + $0x68] sm:$0xff]
    %v209 = vld [vmem:[#allocation7 + $0x70] sm:$0xff]
    %v210 = vld [vmem:[#allocation7 + $0x78] sm:$0xff]
    %v212 = vlaneseq
    %v213 = vshrl.u32 %v212, 7
    %v214 = vsub.s32 0, %v213
    %v215 = vrot.slane %v85, %v214
    %217 = vmatprep.subr.mxu0 0.0
    %218 = vmatpush1.msra.mxu0 %v195
    %219 = vmatprep.subr.mxu0 0.0
    %220 = vmatpush1.msra.mxu0 %v196
    %221 = vmatprep.subr.mxu0 0.0
    %222 = vmatpush1.msra.mxu0 %v197
    %223 = vmatprep.subr.mxu0 0.0
    %224 = vmatpush1.msra.mxu0 %v198
    %225 = vmatprep.subr.mxu0 0.0
    %226 = vmatpush1.msra.mxu0 %v199
    %227 = vmatprep.subr.mxu0 0.0
    %228 = vmatpush1.msra.mxu0 %v200
    %229 = vmatprep.subr.mxu0 0.0
    %230 = vmatpush1.msra.mxu0 %v201
    %231 = vmatprep.subr.mxu0 0.0
    %232 = vmatpush1.msra.mxu0 %v202
    %233 = vmatprep.subr.mxu0 0.0
    %234 = vmatpush1.msra.mxu0 %v203
    %235 = vmatprep.subr.mxu0 0.0
    %236 = vmatpush1.msra.mxu0 %v204
    %237 = vmatprep.subr.mxu0 0.0
    %238 = vmatpush1.msra.mxu0 %v205
    %239 = vmatprep.subr.mxu0 0.0
    %240 = vmatpush1.msra.mxu0 %v206
    %241 = vmatprep.subr.mxu0 0.0
    %242 = vmatpush1.msra.mxu0 %v207
    %243 = vmatprep.subr.mxu0 0.0
    %244 = vmatpush1.msra.mxu0 %v208
    %245 = vmatprep.subr.mxu0 0.0
    %246 = vmatpush1.msra.mxu0 %v209
    %247 = vmatprep.subr.mxu0 0.0
    %248 = vmatpush1.msra.mxu0 %v210
    %249 = vmatprep.subr.mxu0 0.0
    %250 = vmatpush1.msra.mxu0 0.0
    %251 = vmatprep.subr.mxu0 0.0
    %252 = vmatpush1.msra.mxu0 0.0
    %253 = vmatprep.subr.mxu0 0.0
    %254 = vmatpush1.msra.mxu0 0.0
    %255 = vmatprep.subr.mxu0 0.0
    %256 = vmatpush1.msra.mxu0 0.0
    %257 = vmatprep.subr.mxu0 0.0
    %258 = vmatpush1.msra.mxu0 0.0
    %259 = vmatprep.subr.mxu0 0.0
    %260 = vmatpush1.msra.mxu0 0.0
    %261 = vmatprep.subr.mxu0 0.0
    %262 = vmatpush1.msra.mxu0 0.0
    %263 = vmatprep.subr.mxu0 0.0
    %264 = vmatpush1.msra.mxu0 0.0
    %265 = vmatprep.subr.mxu0 0.0
    %266 = vmatpush1.msra.mxu0 0.0
    %267 = vmatprep.subr.mxu0 0.0
    %268 = vmatpush1.msra.mxu0 0.0
    %269 = vmatprep.subr.mxu0 0.0
    %270 = vmatpush1.msra.mxu0 0.0
    %271 = vmatprep.subr.mxu0 0.0
    %272 = vmatpush1.msra.mxu0 0.0
    %273 = vmatprep.subr.mxu0 0.0
    %274 = vmatpush1.msra.mxu0 0.0
    %275 = vmatprep.subr.mxu0 0.0
    %276 = vmatpush1.msra.mxu0 0.0
    %277 = vmatprep.subr.mxu0 0.0
    %278 = vmatpush1.msra.mxu0 0.0
    %279 = vmatprep.subr.mxu0 0.0
    %280 = vmatpush1.msra.mxu0 0.0
    %281 = vmatprep.mubr.f32.mxu0 0.0
    %282 = vmatmul.mubr.f32.gmra.mrb[0].mxu0 %v194
    %v283 = vpop.f32.mrb[0].mxu0
    %v284 = vadd.f32 %v215, %v283
    %v285 = vpop.f32.mrb[0].mxu0
    %286 = vdwg.mxu0
    %v287 = vmax.f32 %v284, 0.0
    %v288 = vand.u32 2147483647, %v284
    %v289 = vsub.f32 0.0, %v288
    %v290 = vmul.f32 %v289, 1.442695
    %v291 = vpow.pop %v290
    %v292 = vadd.f32 %v291, 1.0
    %v293 = vlog2.pop %v292
    %v294 = vmul.f32 %v293, 0.6931472
    %v295 = vmul.f32 -0.5, %v291
    %v296 = vadd.f32 %v295, 1.0
    %v297 = vmul.f32 %v296, %v291
    %v298 = vand.u32 2147483647, %v291
    %vm299 = vcmp.lt.f32.partialorder %v298, 0.0004427343
    %v300 = vsel %vm299, %v297, %v294
    %v301 = vadd.f32 %v287, %v300
    %v302 = vld [vmem:[#allocation8] sm:$0xff]
    %v303 = vld [vmem:[#allocation8 + $0x8] sm:$0xff]
    %v304 = vld [vmem:[#allocation8 + $0x10] sm:$0xff]
    %v305 = vld [vmem:[#allocation8 + $0x18] sm:$0xff]
    %v306 = vld [vmem:[#allocation8 + $0x20] sm:$0xff]
    %v307 = vld [vmem:[#allocation8 + $0x28] sm:$0xff]
    %v308 = vld [vmem:[#allocation8 + $0x30] sm:$0xff]
    %v309 = vld [vmem:[#allocation8 + $0x38] sm:$0xff]
    %v310 = vld [vmem:[#allocation8 + $0x40] sm:$0xff]
    %v311 = vld [vmem:[#allocation8 + $0x48] sm:$0xff]
    %v312 = vld [vmem:[#allocation8 + $0x50] sm:$0xff]
    %v313 = vld [vmem:[#allocation8 + $0x58] sm:$0xff]
    %v314 = vld [vmem:[#allocation8 + $0x60] sm:$0xff]
    %v315 = vld [vmem:[#allocation8 + $0x68] sm:$0xff]
    %v316 = vld [vmem:[#allocation8 + $0x70] sm:$0xff]
    %v317 = vld [vmem:[#allocation8 + $0x78] sm:$0xff]
    %v319 = vlaneseq
    %v320 = vshrl.u32 %v319, 7
    %v321 = vsub.s32 0, %v320
    %v322 = vrot.slane %v86, %v321
    %324 = vmatprep.subr.mxu0 0.0
    %325 = vmatpush1.msra.mxu0 %v302
    %326 = vmatprep.subr.mxu0 0.0
    %327 = vmatpush1.msra.mxu0 %v303
    %328 = vmatprep.subr.mxu0 0.0
    %329 = vmatpush1.msra.mxu0 %v304
    %330 = vmatprep.subr.mxu0 0.0
    %331 = vmatpush1.msra.mxu0 %v305
    %332 = vmatprep.subr.mxu0 0.0
    %333 = vmatpush1.msra.mxu0 %v306
    %334 = vmatprep.subr.mxu0 0.0
    %335 = vmatpush1.msra.mxu0 %v307
    %336 = vmatprep.subr.mxu0 0.0
    %337 = vmatpush1.msra.mxu0 %v308
    %338 = vmatprep.subr.mxu0 0.0
    %339 = vmatpush1.msra.mxu0 %v309
    %340 = vmatprep.subr.mxu0 0.0
    %341 = vmatpush1.msra.mxu0 %v310
    %342 = vmatprep.subr.mxu0 0.0
    %343 = vmatpush1.msra.mxu0 %v311
    %344 = vmatprep.subr.mxu0 0.0
    %345 = vmatpush1.msra.mxu0 %v312
    %346 = vmatprep.subr.mxu0 0.0
    %347 = vmatpush1.msra.mxu0 %v313
    %348 = vmatprep.subr.mxu0 0.0
    %349 = vmatpush1.msra.mxu0 %v314
    %350 = vmatprep.subr.mxu0 0.0
    %351 = vmatpush1.msra.mxu0 %v315
    %352 = vmatprep.subr.mxu0 0.0
    %353 = vmatpush1.msra.mxu0 %v316
    %354 = vmatprep.subr.mxu0 0.0
    %355 = vmatpush1.msra.mxu0 %v317
    %356 = vmatprep.subr.mxu0 0.0
    %357 = vmatpush1.msra.mxu0 0.0
    %358 = vmatprep.subr.mxu0 0.0
    %359 = vmatpush1.msra.mxu0 0.0
    %360 = vmatprep.subr.mxu0 0.0
    %361 = vmatpush1.msra.mxu0 0.0
    %362 = vmatprep.subr.mxu0 0.0
    %363 = vmatpush1.msra.mxu0 0.0
    %364 = vmatprep.subr.mxu0 0.0
    %365 = vmatpush1.msra.mxu0 0.0
    %366 = vmatprep.subr.mxu0 0.0
    %367 = vmatpush1.msra.mxu0 0.0
    %368 = vmatprep.subr.mxu0 0.0
    %369 = vmatpush1.msra.mxu0 0.0
    %370 = vmatprep.subr.mxu0 0.0
    %371 = vmatpush1.msra.mxu0 0.0
    %372 = vmatprep.subr.mxu0 0.0
    %373 = vmatpush1.msra.mxu0 0.0
    %374 = vmatprep.subr.mxu0 0.0
    %375 = vmatpush1.msra.mxu0 0.0
    %376 = vmatprep.subr.mxu0 0.0
    %377 = vmatpush1.msra.mxu0 0.0
    %378 = vmatprep.subr.mxu0 0.0
    %379 = vmatpush1.msra.mxu0 0.0
    %380 = vmatprep.subr.mxu0 0.0
    %381 = vmatpush1.msra.mxu0 0.0
    %382 = vmatprep.subr.mxu0 0.0
    %383 = vmatpush1.msra.mxu0 0.0
    %384 = vmatprep.subr.mxu0 0.0
    %385 = vmatpush1.msra.mxu0 0.0
    %386 = vmatprep.subr.mxu0 0.0
    %387 = vmatpush1.msra.mxu0 0.0
    %388 = vmatprep.mubr.f32.mxu0 0.0
    %389 = vmatmul.mubr.f32.gmra.mrb[0].mxu0 %v301
    %v390 = vpop.f32.mrb[0].mxu0
    %v391 = vadd.f32 %v322, %v390
    %v392 = vpop.f32.mrb[0].mxu0
    %393 = vdwg.mxu0
    %394 = vst [vmem:[#allocation10] sm:$0xff] %v391
    %v395 = vlaneseq
    %v396 = vshrl.u32 %v395, 7
    %s397 = smul.u32 0, 8
    %v398 = vstv %s397
    %v399 = vadd.s32 %v396, %v398
    %vm400 = vcmp.lt.s32.totalorder %v399, 8
    %v401 = vsel %vm400, %v391, 0.0
    %v402 = vrot.slane %v401, 4
    %v403 = vadd.f32 %v401, %v402
    %v404 = vrot.slane %v403, 2
    %v405 = vadd.f32 %v403, %v404
    %v406 = vrot.slane %v405, 1
    %v407 = vadd.f32 %v405, %v406
    %v408 = vmul.f32 %v401, %v401
    %v409 = vrot.slane %v408, 4
    %v410 = vadd.f32 %v408, %v409
    %v411 = vrot.slane %v410, 2
    %v412 = vadd.f32 %v410, %v411
    %v413 = vrot.slane %v412, 1
    %v414 = vadd.f32 %v412, %v413
    %415 = vst [vmem:[#allocation11] sm:$0x1] %v407
    %416 = vst [vmem:[#allocation13] sm:$0x1] %v414
    // Predicated region
    $region46: #{tpu_custom_call.1} parent=1 // pred_check
      _
    $region47: #{tpu_custom_call.1} parent=1 // pred_check_branch
      %418 = sbr.rel (0) target = $region49
    $region48: #{tpu_custom_call.1} parent=1 // pred_region
      %s420 = ssub.s32 128, 128
      %421 = vsyncadd [#allocation4], %s420
      %s423 = sshll.u32 [#allocation10], 4
      %s424 = int_to_ptr.vmem [resolvable:$true] %s423
      %426 = dma.vmem_to_hbm [thread:$0]  %s424, 128, %s7, [#allocation4]
    $region49: #{tpu_custom_call.1} parent=1 // pred_fallthru
      _
    // Predicated region
    $region50: #{tpu_custom_call.1} parent=1 // pred_check
      _
    $region51: #{tpu_custom_call.1} parent=1 // pred_check_branch
      %428 = sbr.rel (0) target = $region53
    $region52: #{tpu_custom_call.1} parent=1 // pred_region
      %s430 = ssub.s32 16, 16
      %431 = vsyncadd [#allocation12], %s430
      %s433 = sshll.u32 [#allocation11], 4
      %s434 = int_to_ptr.vmem [resolvable:$true] %s433
      %436 = dma.vmem_to_hbm [thread:$0]  %s434, 16, %s8, [#allocation12]
    $region53: #{tpu_custom_call.1} parent=1 // pred_fallthru
      _
    // Predicated region
    $region54: #{tpu_custom_call.1} parent=1 // pred_check
      _
    $region55: #{tpu_custom_call.1} parent=1 // pred_check_branch
      %438 = sbr.rel (0) target = $region57
    $region56: #{tpu_custom_call.1} parent=1 // pred_region
      %s440 = ssub.s32 16, 16
      %441 = vsyncadd [#allocation12], %s440
      %s443 = sshll.u32 [#allocation13], 4
      %s444 = int_to_ptr.vmem [resolvable:$true] %s443
      %446 = dma.vmem_to_hbm [thread:$0]  %s444, 16, %s9, [#allocation12]
    $region57: #{tpu_custom_call.1} parent=1 // pred_fallthru
      _
    // Predicated region
    $region58: #{tpu_custom_call.1} parent=1 // pred_check
      _
    $region59: #{tpu_custom_call.1} parent=1 // pred_check_branch
      %448 = sbr.rel (0) target = $region61
    $region60: #{tpu_custom_call.1} parent=1 // pred_region
      %449 = dma.done [#allocation4], 128
    $region61: #{tpu_custom_call.1} parent=1 // pred_fallthru
      _
    // Predicated region
    $region62: #{tpu_custom_call.1} parent=1 // pred_check
      _
    $region63: #{tpu_custom_call.1} parent=1 // pred_check_branch
      %451 = sbr.rel (0) target = $region65
    $region64: #{tpu_custom_call.1} parent=1 // pred_region
      %452 = dma.done [#allocation12], 16
    $region65: #{tpu_custom_call.1} parent=1 // pred_fallthru
      _
    // Predicated region
    $region66: #{tpu_custom_call.1} parent=1 // pred_check
      _
    $region67: #{tpu_custom_call.1} parent=1 // pred_check_branch
      %454 = sbr.rel (0) target = $region69
    $region68: #{tpu_custom_call.1} parent=1 // pred_region
      %455 = dma.done [#allocation12], 16
    $region69: #{tpu_custom_call.1} parent=1 // pred_fallthru
      _
    %456 = vsyncpa [#allocation3], 1
    %457 = vsyncpa [#allocation6], 1
    %458 = vsyncpa [#allocation9], 1
    %459 = vsyncpa [#allocation4], 1
    %460 = vsyncpa [#allocation12], 1

</llo_original>
